<compile_context>
chip_gen: v7x
topology: tpu7x:2x2x1
jax: 0.10.0
libtpu: 0.0.40
codegen_flags: <defaults>
</compile_context>

<pallas_src>
import functools

import jax
import jax.numpy as jnp
from jax.experimental import pallas as pl
from jax.experimental.pallas import tpu as pltpu


def _criterion_kernel(logits_ref, pred_ref, tgtce_ref, tgtl1_ref, out_ref):
    # One N-tile, all L levels.
    #   logits_ref : (L, tn, Cp)  native dtype, real (unpadded) class axis
    #   pred_ref   : (L, 8, tn)   sublanes 0/1 = pred_juncs x/y, 2 = pred_depth
    #   tgtce_ref  : (tn, 8) f32  cols 0 = target class, 1 = per-row CE weight
    #   tgtl1_ref  : (8, tn) f32  rows 0/1 = tgt junc x/y, 2 = tgt depth, 3 = mask
    #   out_ref    : (1, 8, 128)  lanes 0..3 = [ce_num, ce_den, junc_sum, depth_sum]
    logits = logits_ref[...].astype(jnp.float32)          # (L, tn, cp)
    _, tn, cp = logits.shape

    tc = tgtce_ref[:, 0:1].astype(jnp.int32)               # (tn, 1)
    w_item = tgtce_ref[:, 1:2]                              # (tn, 1) = empty_weight[tc]

    # one-hot of target class via lane iota compare (pad rows have w_item = 0).
    cls_iota = jax.lax.broadcasted_iota(jnp.int32, (tn, cp), 1)
    onehot = (cls_iota == tc).astype(jnp.float32)           # (tn, cp)

    # Weighted cross entropy, numerator summed over all L levels; the
    # denominator (sum of per-row weights) is level-invariant and emitted
    # separately so the wrapper divides once over all tiles.
    m = jnp.max(logits, axis=-1, keepdims=True)              # (L, tn, 1)
    lse = m + jnp.log(jnp.sum(jnp.exp(logits - m), axis=-1, keepdims=True))
    sel = jnp.sum(onehot[None, :, :] * logits, axis=-1, keepdims=True)   # (L, tn, 1)
    ce_num = jnp.sum(w_item[None, :, :] * (lse - sel))       # -w * logp[target]
    ce_den = jnp.sum(w_item)

    # L1 losses over matched queries, lane-dense over N (/num_items in wrapper).
    pred = pred_ref[...].astype(jnp.float32)                  # (L, 8, tn)
    tj = tgtl1_ref[0:2, :]                                     # (2, tn)
    td = tgtl1_ref[2:3, :]                                     # (1, tn)
    mk = tgtl1_ref[3:4, :]                                     # (1, tn)
    junc = jnp.sum(jnp.abs(pred[:, 0:2, :] - tj[None, :, :]) * mk[None, :, :])
    depth = jnp.sum(jnp.abs(pred[:, 2:3, :] - td[None, :, :]) * mk[None, :, :])

    lane = jax.lax.broadcasted_iota(jnp.int32, (1, 8, 128), 2)
    out_ref[...] = (jnp.where(lane == 0, ce_num, 0.0)
                    + jnp.where(lane == 1, ce_den, 0.0)
                    + jnp.where(lane == 2, junc, 0.0)
                    + jnp.where(lane == 3, depth, 0.0))


def _pick_tile_n(n, nlvl, cp_pad, itemsize):
    """N-tile size: multiple of 128, double-buffered logits block <= ~8 MiB."""
    npad = ((n + 127) // 128) * 128
    tile = 2048
    while tile > 128 and nlvl * tile * cp_pad * itemsize * 2 > 8 * 1024 * 1024:
        tile //= 2
    return max(128, min(tile, npad))


@functools.partial(jax.jit, static_argnames=("num_classes", "tile_n"))
def set_criterion_forward(pred_logits, pred_juncs, pred_depth,
                          target_classes, target_juncs, target_depth,
                          match_mask, empty_weight, num_items,
                          *, num_classes, tile_n=None):
    """pred_logits: [L, B, Q, C+1]; pred_juncs: [L, B, Q, 2]; pred_depth: [L, B, Q, 1].
    Dense targets are [B, Q, ...] (same for all levels; matcher indices fixed)."""
    del num_classes  # class count is taken from pred_logits' last dim
    L, B, Q, Cp = pred_logits.shape
    N = B * Q

    itemsize = jnp.dtype(pred_logits.dtype).itemsize
    cp_vmem = ((Cp + 127) // 128) * 128          # VMEM lane padding (on-chip only)
    if tile_n is None:
        tile_n = _pick_tile_n(N, L, cp_vmem, itemsize)
    num_tiles = pl.cdiv(N, tile_n)
    Npad = num_tiles * tile_n

    # Logits: real class width, rows padded to a tile multiple (pad rows: w=0).
    logits = pred_logits.reshape(L, N, Cp)
    logits = jnp.pad(logits, ((0, 0), (0, Npad - N), (0, 0)))

    # Regression predictions repacked with N on the lane axis: (L, 8, Npad).
    pj = pred_juncs.reshape(L, N, 2)
    pd = pred_depth.reshape(L, N, 1)
    pred_side = jnp.swapaxes(jnp.concatenate([pj, pd], axis=-1), 1, 2)   # (L, 3, N)
    pred_side = jnp.pad(pred_side, ((0, 0), (0, 5), (0, Npad - N)))       # (L, 8, Npad)

    # CE-side per-query data, N on sublanes (matches logits orientation): (Npad, 8).
    tc = target_classes.reshape(N).astype(jnp.int32)
    w_item = empty_weight.reshape(Cp).astype(jnp.float32)[tc]             # (N,)
    tgt_ce = jnp.stack([tc.astype(jnp.float32), w_item], axis=1)          # (N, 2)
    tgt_ce = jnp.pad(tgt_ce, ((0, Npad - N), (0, 6)))                     # (Npad, 8)

    # L1-side per-query data, N on lanes: (8, Npad).
    tj = target_juncs.reshape(N, 2).astype(jnp.float32)
    td = target_depth.reshape(N, 1).astype(jnp.float32)
    mk = match_mask.reshape(N, 1).astype(jnp.float32)
    tgt_l1 = jnp.concatenate([tj, td, mk], axis=-1).T                     # (4, N)
    tgt_l1 = jnp.pad(tgt_l1, ((0, 4), (0, Npad - N)))                     # (8, Npad)

    # VMEM budget: block footprint (with on-chip lane padding) x double-buffer + slack,
    # capped below v7x's 64 MiB physical VMEM.
    block_bytes = (L * tile_n * cp_vmem * itemsize
                   + L * 8 * tile_n * itemsize
                   + tile_n * 128 * 4 + 8 * tile_n * 4
                   + 8 * 128 * 4)
    vmem_limit = int(min(max(4 * block_bytes, 8 * 1024 * 1024), 60 * 1024 * 1024))

    cost = pl.CostEstimate(
        flops=int(L * N * Cp * 6 + L * N * 10 + N * Cp * 2),
        transcendentals=int(L * N * Cp + L * N),
        bytes_accessed=int(logits.size * itemsize
                           + pred_side.size * jnp.dtype(pred_side.dtype).itemsize
                           + tgt_ce.size * 4 + tgt_l1.size * 4
                           + num_tiles * 8 * 128 * 4),
    )

    out = pl.pallas_call(
        _criterion_kernel,
        out_shape=jax.ShapeDtypeStruct((num_tiles, 8, 128), jnp.float32),
        grid=(num_tiles,),
        in_specs=[
            pl.BlockSpec((L, tile_n, Cp), lambda i: (0, i, 0)),
            pl.BlockSpec((L, 8, tile_n), lambda i: (0, 0, i)),
            pl.BlockSpec((tile_n, 8), lambda i: (i, 0)),
            pl.BlockSpec((8, tile_n), lambda i: (0, i)),
        ],
        out_specs=pl.BlockSpec((1, 8, 128), lambda i: (i, 0, 0)),
        compiler_params=pltpu.CompilerParams(
            dimension_semantics=("parallel",),
            vmem_limit_bytes=vmem_limit),
        cost_estimate=cost,
    )(logits, pred_side, tgt_ce, tgt_l1)

    partial = jnp.sum(out[:, 0, :], axis=0)                    # (128,) lane-dense partials
    ni = jnp.maximum(num_items.astype(jnp.float32), 1.0)
    return {
        "loss_ce": partial[0] / partial[1],
        "loss_junc": partial[2] / ni,
        "loss_depth": partial[3] / ni,
    }


def _reference(pred_logits, target_classes, empty_weight, pred_juncs, target_juncs,
               pred_depth, target_depth, match_mask, num_items):
    """Pure-JAX reference of the same loss (for a silent correctness check)."""
    L = pred_logits.shape[0]
    ce_tot, j_tot, d_tot = 0.0, 0.0, 0.0
    for l in range(L):
        logp = jax.nn.log_softmax(pred_logits[l].astype(jnp.float32), axis=-1)
        w_item = empty_weight[target_classes]
        nll = -jnp.take_along_axis(logp, target_classes[..., None], axis=-1)[..., 0]
        ce_tot = ce_tot + jnp.sum(w_item * nll) / jnp.sum(w_item)
        m = match_mask[..., None]
        j_tot = j_tot + jnp.sum(jnp.abs(pred_juncs[l] - target_juncs) * m)
        d_tot = d_tot + jnp.sum(jnp.abs(pred_depth[l] - target_depth) * m)
    ni = jnp.maximum(num_items, 1.0)
    return ce_tot, j_tot / ni, d_tot / ni


def _build_case(key, L, B, Q, num_classes, T, eos_coef, logits_dtype=jnp.float32):
    Cp = num_classes + 1
    k1, k2, k3, k4, k5, k6 = jax.random.split(key, 6)
    pred_logits = jax.random.normal(k1, (L, B, Q, Cp), jnp.float32).astype(logits_dtype)
    pred_juncs = jax.random.normal(k2, (L, B, Q, 2), jnp.float32)
    pred_depth = jax.random.normal(k3, (L, B, Q, 1), jnp.float32)

    labels = jax.random.randint(k4, (B, T), 0, num_classes)
    junction_hidden = jax.random.normal(k5, (B, T, 2), jnp.float32)
    juncs_hidden_3d = jax.random.normal(k6, (B, T, 3), jnp.float32)

    # Deterministic matcher indices (src query index, tgt index) per image.
    # TODO(synk): Hungarian matching replaced by fixed deterministic assignment.
    src_idx = (jnp.arange(T)[None, :] * 3 + jnp.arange(B)[:, None]) % Q
    tgt_idx = jnp.tile(jnp.arange(T)[None, :], (B, 1))

    target_classes = jnp.full((B, Q), num_classes, dtype=jnp.int32)
    target_juncs = jnp.zeros((B, Q, 2), jnp.float32)
    target_depth = jnp.zeros((B, Q, 1), jnp.float32)
    match_mask = jnp.zeros((B, Q), jnp.float32)
    for b in range(B):
        target_classes = target_classes.at[b, src_idx[b]].set(labels[b, tgt_idx[b]].astype(jnp.int32))
        target_juncs = target_juncs.at[b, src_idx[b]].set(junction_hidden[b, tgt_idx[b]])
        target_depth = target_depth.at[b, src_idx[b], 0].set(juncs_hidden_3d[b, tgt_idx[b], -1])
        match_mask = match_mask.at[b, src_idx[b]].set(1.0)

    empty_weight = jnp.ones((Cp,), jnp.float32).at[-1].set(eos_coef)
    num_items = jnp.asarray(float(B * T), jnp.float32)
    return (pred_logits, pred_juncs, pred_depth, target_classes, target_juncs,
            target_depth, match_mask, empty_weight, num_items)


def _run_and_check(case, num_classes, tile_n=None, rtol=1e-5, atol=1e-5):
    (pred_logits, pred_juncs, pred_depth, target_classes, target_juncs,
     target_depth, match_mask, empty_weight, num_items) = case
    losses = set_criterion_forward(pred_logits, pred_juncs, pred_depth,
                                   target_classes, target_juncs, target_depth,
                                   match_mask, empty_weight, num_items,
                                   num_classes=num_classes, tile_n=tile_n)
    jax.block_until_ready(losses)
    ref_ce, ref_j, ref_d = _reference(pred_logits, target_classes, empty_weight,
                                      pred_juncs, target_juncs, pred_depth,
                                      target_depth, match_mask, num_items)
    assert jnp.allclose(losses["loss_ce"], ref_ce, rtol=rtol, atol=atol)
    assert jnp.allclose(losses["loss_junc"], ref_j, rtol=rtol, atol=atol)
    assert jnp.allclose(losses["loss_depth"], ref_d, rtol=rtol, atol=atol)
    return losses


if __name__ == "__main__":
    key = jax.random.PRNGKey(0)
    k_a, k_b = jax.random.split(key)

    # Case 1: small shapes consistent with the module (single N tile).
    case1 = _build_case(k_a, L=3, B=2, Q=8, num_classes=3, T=4, eos_coef=0.1)
    _run_and_check(case1, num_classes=3)

    # Case 2: exercises the multi-tile grid (3 tiles of 128 rows) and the
    # bf16-over-HBM logits path (kernel casts to f32 after load).
    case2 = _build_case(k_b, L=2, B=2, Q=160, num_classes=5, T=7, eos_coef=0.1,
                        logits_dtype=jnp.bfloat16)
    _run_and_check(case2, num_classes=5, tile_n=128, rtol=1e-4, atol=1e-4)

    print("KERNEL_OK")
</pallas_src>

<mosaic_0001>
module attributes {stable_mosaic.version = 11 : i64} {
  func.func @_criterion_kernel(%arg0: i32, %arg1: memref<3x128x4xf32, #tpu.memory_space<vmem>>, %arg2: memref<3x8x128xf32, #tpu.memory_space<vmem>>, %arg3: memref<128x8xf32, #tpu.memory_space<vmem>>, %arg4: memref<8x128xf32, #tpu.memory_space<vmem>>, %arg5: memref<1x8x128xf32, #tpu.memory_space<vmem>>) attributes {dimension_semantics = [#tpu.dimension_semantics<parallel>], iteration_bounds = array<i64: 1>, scalar_prefetch = 0 : i64, scratch_operands = 0 : i64, tpu.core_type = #tpu.core_type<tc>, window_params = [{transform_indices = @transform_0, window_bounds = array<i64: 3, 128, 4>}, {transform_indices = @transform_1, window_bounds = array<i64: 3, 8, 128>}, {transform_indices = @transform_2, window_bounds = array<i64: 128, 8>}, {transform_indices = @transform_3, window_bounds = array<i64: 8, 128>}, {transform_indices = @transform_4, window_bounds = array<i64: 1, 8, 128>}]} {
    %c0 = arith.constant 0 : index
    %c0_0 = arith.constant 0 : index
    %c0_1 = arith.constant 0 : index
    %0 = vector.load %arg1[%c0, %c0_0, %c0_1] : memref<3x128x4xf32, #tpu.memory_space<vmem>>, vector<3x128x4xf32>
    %c0_2 = arith.constant 0 : index
    %c0_3 = arith.constant 0 : index
    %1 = vector.load %arg3[%c0_2, %c0_3] : memref<128x8xf32, #tpu.memory_space<vmem>>, vector<128x1xf32>
    %2 = arith.fptosi %1 : vector<128x1xf32> to vector<128x1xi32>
    %c0_4 = arith.constant 0 : index
    %c1 = arith.constant 1 : index
    %3 = vector.load %arg3[%c0_4, %c1] : memref<128x8xf32, #tpu.memory_space<vmem>>, vector<128x1xf32>
    %4 = tpu.iota {dimensions = array<i32: 1>} : vector<128x4xi32>
    %5 = vector.broadcast %2 : vector<128x1xi32> to vector<128x4xi32>
    %6 = arith.cmpi eq, %4, %5 : vector<128x4xi32>
    %7 = arith.extui %6 : vector<128x4xi1> to vector<128x4xi32>
    %8 = arith.sitofp %7 : vector<128x4xi32> to vector<128x4xf32>
    %cst = arith.constant dense<0xFF800000> : vector<3x128xf32>
    %9 = vector.multi_reduction <maximumf>, %0, %cst [2] : vector<3x128x4xf32> to vector<3x128xf32>
    %10 = vector.shape_cast %9 : vector<3x128xf32> to vector<3x128x1xf32>
    %11 = vector.broadcast %10 : vector<3x128x1xf32> to vector<3x128x4xf32>
    %12 = arith.subf %0, %11 : vector<3x128x4xf32>
    %13 = math.exp %12 : vector<3x128x4xf32>
    %cst_5 = arith.constant dense<0.000000e+00> : vector<3x128xf32>
    %14 = vector.multi_reduction <add>, %13, %cst_5 [2] : vector<3x128x4xf32> to vector<3x128xf32>
    %15 = vector.shape_cast %14 : vector<3x128xf32> to vector<3x128x1xf32>
    %16 = math.log %15 : vector<3x128x1xf32>
    %17 = arith.addf %10, %16 : vector<3x128x1xf32>
    %18 = vector.shape_cast %8 : vector<128x4xf32> to vector<1x128x4xf32>
    %19 = vector.broadcast %18 : vector<1x128x4xf32> to vector<3x128x4xf32>
    %20 = arith.mulf %19, %0 : vector<3x128x4xf32>
    %cst_6 = arith.constant dense<0.000000e+00> : vector<3x128xf32>
    %21 = vector.multi_reduction <add>, %20, %cst_6 [2] : vector<3x128x4xf32> to vector<3x128xf32>
    %22 = vector.shape_cast %21 : vector<3x128xf32> to vector<3x128x1xf32>
    %23 = vector.shape_cast %3 : vector<128x1xf32> to vector<1x128x1xf32>
    %24 = arith.subf %17, %22 : vector<3x128x1xf32>
    %25 = vector.broadcast %23 : vector<1x128x1xf32> to vector<3x128x1xf32>
    %26 = arith.mulf %25, %24 : vector<3x128x1xf32>
    %27 = vector.shape_cast %26 : vector<3x128x1xf32> to vector<1x3x128x1xf32>
    %cst_7 = arith.constant dense<0.000000e+00> : vector<1xf32>
    %28 = vector.multi_reduction <add>, %27, %cst_7 [1, 2, 3] : vector<1x3x128x1xf32> to vector<1xf32>
    %29 = vector.shape_cast %28 : vector<1xf32> to vector<1x1x1x1xf32>
    %30 = vector.extract %29[0, 0, 0, 0] : f32 from vector<1x1x1x1xf32>
    %31 = vector.shape_cast %3 : vector<128x1xf32> to vector<1x128x1xf32>
    %cst_8 = arith.constant dense<0.000000e+00> : vector<1xf32>
    %32 = vector.multi_reduction <add>, %31, %cst_8 [1, 2] : vector<1x128x1xf32> to vector<1xf32>
    %33 = vector.shape_cast %32 : vector<1xf32> to vector<1x1x1xf32>
    %34 = vector.extract %33[0, 0, 0] : f32 from vector<1x1x1xf32>
    %c0_9 = arith.constant 0 : index
    %c0_10 = arith.constant 0 : index
    %c0_11 = arith.constant 0 : index
    %35 = vector.load %arg2[%c0_9, %c0_10, %c0_11] : memref<3x8x128xf32, #tpu.memory_space<vmem>>, vector<3x8x128xf32>
    %c0_12 = arith.constant 0 : index
    %c0_13 = arith.constant 0 : index
    %36 = vector.load %arg4[%c0_12, %c0_13] : memref<8x128xf32, #tpu.memory_space<vmem>>, vector<2x128xf32>
    %c2 = arith.constant 2 : index
    %c0_14 = arith.constant 0 : index
    %37 = vector.load %arg4[%c2, %c0_14] : memref<8x128xf32, #tpu.memory_space<vmem>>, vector<1x128xf32>
    %c3 = arith.constant 3 : index
    %c0_15 = arith.constant 0 : index
    %38 = vector.load %arg4[%c3, %c0_15] : memref<8x128xf32, #tpu.memory_space<vmem>>, vector<1x128xf32>
    %39 = vector.extract_strided_slice %35 {offsets = [0, 0, 0], sizes = [3, 2, 128], strides = [1, 1, 1]} : vector<3x8x128xf32> to vector<3x2x128xf32>
    %40 = vector.shape_cast %36 : vector<2x128xf32> to vector<1x2x128xf32>
    %41 = vector.broadcast %40 : vector<1x2x128xf32> to vector<3x2x128xf32>
    %42 = arith.subf %39, %41 : vector<3x2x128xf32>
    %43 = math.absf %42 : vector<3x2x128xf32>
    %44 = vector.shape_cast %38 : vector<1x128xf32> to vector<1x1x128xf32>
    %45 = vector.broadcast %44 : vector<1x1x128xf32> to vector<3x2x128xf32>
    %46 = arith.mulf %43, %45 : vector<3x2x128xf32>
    %47 = vector.shape_cast %46 : vector<3x2x128xf32> to vector<1x3x2x128xf32>
    %cst_16 = arith.constant dense<0.000000e+00> : vector<1xf32>
    %48 = vector.multi_reduction <add>, %47, %cst_16 [1, 2, 3] : vector<1x3x2x128xf32> to vector<1xf32>
    %49 = vector.shape_cast %48 : vector<1xf32> to vector<1x1x1x1xf32>
    %50 = vector.extract %49[0, 0, 0, 0] : f32 from vector<1x1x1x1xf32>
    %51 = vector.extract_strided_slice %35 {offsets = [0, 2, 0], sizes = [3, 1, 128], strides = [1, 1, 1]} : vector<3x8x128xf32> to vector<3x1x128xf32>
    %52 = vector.shape_cast %37 : vector<1x128xf32> to vector<1x1x128xf32>
    %53 = vector.broadcast %52 : vector<1x1x128xf32> to vector<3x1x128xf32>
    %54 = arith.subf %51, %53 : vector<3x1x128xf32>
    %55 = math.absf %54 : vector<3x1x128xf32>
    %56 = vector.shape_cast %38 : vector<1x128xf32> to vector<1x1x128xf32>
    %57 = vector.broadcast %56 : vector<1x1x128xf32> to vector<3x1x128xf32>
    %58 = arith.mulf %55, %57 : vector<3x1x128xf32>
    %59 = vector.shape_cast %58 : vector<3x1x128xf32> to vector<1x3x1x128xf32>
    %cst_17 = arith.constant dense<0.000000e+00> : vector<1xf32>
    %60 = vector.multi_reduction <add>, %59, %cst_17 [1, 2, 3] : vector<1x3x1x128xf32> to vector<1xf32>
    %61 = vector.shape_cast %60 : vector<1xf32> to vector<1x1x1x1xf32>
    %62 = vector.extract %61[0, 0, 0, 0] : f32 from vector<1x1x1x1xf32>
    %63 = tpu.iota {dimensions = array<i32: 2>} : vector<1x8x128xi32>
    %c0_i32 = arith.constant 0 : i32
    %64 = vector.broadcast %c0_i32 : i32 to vector<1x8x128xi32>
    %65 = arith.cmpi eq, %63, %64 : vector<1x8x128xi32>
    %cst_18 = arith.constant 0.000000e+00 : f32
    %66 = vector.broadcast %30 : f32 to vector<1x8x128xf32>
    %67 = vector.broadcast %cst_18 : f32 to vector<1x8x128xf32>
    %68 = arith.select %65, %66, %67 : vector<1x8x128xi1>, vector<1x8x128xf32>
    %c1_i32 = arith.constant 1 : i32
    %69 = vector.broadcast %c1_i32 : i32 to vector<1x8x128xi32>
    %70 = arith.cmpi eq, %63, %69 : vector<1x8x128xi32>
    %cst_19 = arith.constant 0.000000e+00 : f32
    %71 = vector.broadcast %34 : f32 to vector<1x8x128xf32>
    %72 = vector.broadcast %cst_19 : f32 to vector<1x8x128xf32>
    %73 = arith.select %70, %71, %72 : vector<1x8x128xi1>, vector<1x8x128xf32>
    %74 = arith.addf %68, %73 : vector<1x8x128xf32>
    %c2_i32 = arith.constant 2 : i32
    %75 = vector.broadcast %c2_i32 : i32 to vector<1x8x128xi32>
    %76 = arith.cmpi eq, %63, %75 : vector<1x8x128xi32>
    %cst_20 = arith.constant 0.000000e+00 : f32
    %77 = vector.broadcast %50 : f32 to vector<1x8x128xf32>
    %78 = vector.broadcast %cst_20 : f32 to vector<1x8x128xf32>
    %79 = arith.select %76, %77, %78 : vector<1x8x128xi1>, vector<1x8x128xf32>
    %80 = arith.addf %74, %79 : vector<1x8x128xf32>
    %c3_i32 = arith.constant 3 : i32
    %81 = vector.broadcast %c3_i32 : i32 to vector<1x8x128xi32>
    %82 = arith.cmpi eq, %63, %81 : vector<1x8x128xi32>
    %cst_21 = arith.constant 0.000000e+00 : f32
    %83 = vector.broadcast %62 : f32 to vector<1x8x128xf32>
    %84 = vector.broadcast %cst_21 : f32 to vector<1x8x128xf32>
    %85 = arith.select %82, %83, %84 : vector<1x8x128xi1>, vector<1x8x128xf32>
    %86 = arith.addf %80, %85 : vector<1x8x128xf32>
    %c0_22 = arith.constant 0 : index
    %c0_23 = arith.constant 0 : index
    %c0_24 = arith.constant 0 : index
    %87 = vector.load %arg5[%c0_22, %c0_23, %c0_24] : memref<1x8x128xf32, #tpu.memory_space<vmem>>, vector<1x8x128xf32>
    tpu.vector_store %arg5[%c0_22, %c0_23, %c0_24], %86 {strides = array<i32>} : memref<1x8x128xf32, #tpu.memory_space<vmem>>, vector<1x8x128xf32>,
    return
  }
  func.func @transform_0(%arg0: i32) -> (i32, i32, i32) {
    %c0_i32 = arith.constant 0 : i32
    %c0_i32_0 = arith.constant 0 : i32
    %c0_i32_1 = arith.constant 0 : i32
    return %c0_i32, %arg0, %c0_i32_0 : i32, i32, i32
  }
  func.func @transform_1(%arg0: i32) -> (i32, i32, i32) {
    %c0_i32 = arith.constant 0 : i32
    %c0_i32_0 = arith.constant 0 : i32
    %c0_i32_1 = arith.constant 0 : i32
    return %c0_i32, %c0_i32_0, %arg0 : i32, i32, i32
  }
  func.func @transform_2(%arg0: i32) -> (i32, i32) {
    %c0_i32 = arith.constant 0 : i32
    %c0_i32_0 = arith.constant 0 : i32
    return %arg0, %c0_i32 : i32, i32
  }
  func.func @transform_3(%arg0: i32) -> (i32, i32) {
    %c0_i32 = arith.constant 0 : i32
    %c0_i32_0 = arith.constant 0 : i32
    return %c0_i32, %arg0 : i32, i32
  }
  func.func @transform_4(%arg0: i32) -> (i32, i32, i32) {
    %c0_i32 = arith.constant 0 : i32
    %c0_i32_0 = arith.constant 0 : i32
    %c0_i32_1 = arith.constant 0 : i32
    return %arg0, %c0_i32, %c0_i32_0 : i32, i32, i32
  }
}

</mosaic_0001>

<llo_original>
// kernel: set_criterion_forward.1
$region0: #{set_criterion_forward.1}
  #allocation0 [shape = 'u32[]', space=smem, size = 0x4, offset = 0x4, fixed_abs, tag = 'smem constant byte address 0x4 - core index']
  #allocation1 [shape = 'u32[144,128]{1,0:T(1,128)}', space=vmem, size = 0x12000, scoped, tag = 'internal scratch']
  %s0 = inlined_call_operand.vmem [shape: f32[3,128,4], index: 0, kind: input, shape index: {}]
  %s1 = inlined_call_operand.vmem [shape: f32[3,8,128], index: 1, kind: input, shape index: {}]
  %s2 = inlined_call_operand.vmem [shape: f32[128,8], index: 2, kind: input, shape index: {}]
  %s3 = inlined_call_operand.vmem [shape: f32[8,128], index: 3, kind: input, shape index: {}]
  %s4 = inlined_call_operand.vmem [shape: f32[1,8,128], index: 4, kind: output, shape index: {}]
  %s5 = sld [smem:[#allocation0]]
  $region26: #{set_criterion_forward.1} parent=0
    _
  %s7 = ssub.s32 1, %s5
  %s8 = scalar_select 0, %s7, %s5
  // Predicated region
  $region2: #{set_criterion_forward.1} parent=0 // pred_check
    _
  $region3: #{set_criterion_forward.1} parent=0 // pred_check_branch
    %10 = sbr.rel (0) target = $region5
  $region4: #{set_criterion_forward.1} parent=0 // pred_region
    _
  $region5: #{set_criterion_forward.1} parent=0 // pred_fallthru
    _
  // Predicated region
  $region6: #{set_criterion_forward.1} parent=0 // pred_check
    _
  $region7: #{set_criterion_forward.1} parent=0 // pred_check_branch
    %12 = sbr.rel (0) target = $region9
  $region8: #{set_criterion_forward.1} parent=0 // pred_region
    _
  $region9: #{set_criterion_forward.1} parent=0 // pred_fallthru
    _
  // Predicated region
  $region10: #{set_criterion_forward.1} parent=0 // pred_check
    _
  $region11: #{set_criterion_forward.1} parent=0 // pred_check_branch
    %14 = sbr.rel (0) target = $region13
  $region12: #{set_criterion_forward.1} parent=0 // pred_region
    _
  $region13: #{set_criterion_forward.1} parent=0 // pred_fallthru
    _
  // Predicated region
  $region14: #{set_criterion_forward.1} parent=0 // pred_check
    _
  $region15: #{set_criterion_forward.1} parent=0 // pred_check_branch
    %16 = sbr.rel (0) target = $region17
  $region16: #{set_criterion_forward.1} parent=0 // pred_region
    _
  $region17: #{set_criterion_forward.1} parent=0 // pred_fallthru
    _
  %v17 = vld [vmem:[%s0] sm:$0xff]
  %v18 = vld [vmem:[%s0 + $0x8] sm:$0xff]
  %v19 = vld [vmem:[%s0 + $0x10] sm:$0xff]
  %v20 = vld [vmem:[%s0 + $0x18] sm:$0xff]
  %v21 = vld [vmem:[%s0 + $0x20] sm:$0xff]
  %v22 = vld [vmem:[%s0 + $0x28] sm:$0xff]
  %v23 = vld [vmem:[%s0 + $0x30] sm:$0xff]
  %v24 = vld [vmem:[%s0 + $0x38] sm:$0xff]
  %v25 = vld [vmem:[%s0 + $0x40] sm:$0xff]
  %v26 = vld [vmem:[%s0 + $0x48] sm:$0xff]
  %v27 = vld [vmem:[%s0 + $0x50] sm:$0xff]
  %v28 = vld [vmem:[%s0 + $0x58] sm:$0xff]
  %v29 = vld [vmem:[%s0 + $0x60] sm:$0xff]
  %v30 = vld [vmem:[%s0 + $0x68] sm:$0xff]
  %v31 = vld [vmem:[%s0 + $0x70] sm:$0xff]
  %v32 = vld [vmem:[%s0 + $0x78] sm:$0xff]
  %v33 = vld [vmem:[%s0 + $0x80] sm:$0xff]
  %v34 = vld [vmem:[%s0 + $0x88] sm:$0xff]
  %v35 = vld [vmem:[%s0 + $0x90] sm:$0xff]
  %v36 = vld [vmem:[%s0 + $0x98] sm:$0xff]
  %v37 = vld [vmem:[%s0 + $0xa0] sm:$0xff]
  %v38 = vld [vmem:[%s0 + $0xa8] sm:$0xff]
  %v39 = vld [vmem:[%s0 + $0xb0] sm:$0xff]
  %v40 = vld [vmem:[%s0 + $0xb8] sm:$0xff]
  %v41 = vld [vmem:[%s0 + $0xc0] sm:$0xff]
  %v42 = vld [vmem:[%s0 + $0xc8] sm:$0xff]
  %v43 = vld [vmem:[%s0 + $0xd0] sm:$0xff]
  %v44 = vld [vmem:[%s0 + $0xd8] sm:$0xff]
  %v45 = vld [vmem:[%s0 + $0xe0] sm:$0xff]
  %v46 = vld [vmem:[%s0 + $0xe8] sm:$0xff]
  %v47 = vld [vmem:[%s0 + $0xf0] sm:$0xff]
  %v48 = vld [vmem:[%s0 + $0xf8] sm:$0xff]
  %v49 = vld [vmem:[%s0 + $0x100] sm:$0xff]
  %v50 = vld [vmem:[%s0 + $0x108] sm:$0xff]
  %v51 = vld [vmem:[%s0 + $0x110] sm:$0xff]
  %v52 = vld [vmem:[%s0 + $0x118] sm:$0xff]
  %v53 = vld [vmem:[%s0 + $0x120] sm:$0xff]
  %v54 = vld [vmem:[%s0 + $0x128] sm:$0xff]
  %v55 = vld [vmem:[%s0 + $0x130] sm:$0xff]
  %v56 = vld [vmem:[%s0 + $0x138] sm:$0xff]
  %v57 = vld [vmem:[%s0 + $0x140] sm:$0xff]
  %v58 = vld [vmem:[%s0 + $0x148] sm:$0xff]
  %v59 = vld [vmem:[%s0 + $0x150] sm:$0xff]
  %v60 = vld [vmem:[%s0 + $0x158] sm:$0xff]
  %v61 = vld [vmem:[%s0 + $0x160] sm:$0xff]
  %v62 = vld [vmem:[%s0 + $0x168] sm:$0xff]
  %v63 = vld [vmem:[%s0 + $0x170] sm:$0xff]
  %v64 = vld [vmem:[%s0 + $0x178] sm:$0xff]
  %v65 = vld [vmem:[%s2] sm:$0xff]
  %v66 = vld [vmem:[%s2 + $0x8] sm:$0xff]
  %v67 = vld [vmem:[%s2 + $0x10] sm:$0xff]
  %v68 = vld [vmem:[%s2 + $0x18] sm:$0xff]
  %v69 = vld [vmem:[%s2 + $0x20] sm:$0xff]
  %v70 = vld [vmem:[%s2 + $0x28] sm:$0xff]
  %v71 = vld [vmem:[%s2 + $0x30] sm:$0xff]
  %v72 = vld [vmem:[%s2 + $0x38] sm:$0xff]
  %v73 = vld [vmem:[%s2 + $0x40] sm:$0xff]
  %v74 = vld [vmem:[%s2 + $0x48] sm:$0xff]
  %v75 = vld [vmem:[%s2 + $0x50] sm:$0xff]
  %v76 = vld [vmem:[%s2 + $0x58] sm:$0xff]
  %v77 = vld [vmem:[%s2 + $0x60] sm:$0xff]
  %v78 = vld [vmem:[%s2 + $0x68] sm:$0xff]
  %v79 = vld [vmem:[%s2 + $0x70] sm:$0xff]
  %v80 = vld [vmem:[%s2 + $0x78] sm:$0xff]
  %v81 = vcvt.f32.s32.to.zero.pseudo %v65
  %v82 = vcvt.f32.s32.to.zero.pseudo %v66
  %v83 = vcvt.f32.s32.to.zero.pseudo %v67
  %v84 = vcvt.f32.s32.to.zero.pseudo %v68
  %v85 = vcvt.f32.s32.to.zero.pseudo %v69
  %v86 = vcvt.f32.s32.to.zero.pseudo %v70
  %v87 = vcvt.f32.s32.to.zero.pseudo %v71
  %v88 = vcvt.f32.s32.to.zero.pseudo %v72
  %v89 = vcvt.f32.s32.to.zero.pseudo %v73
  %v90 = vcvt.f32.s32.to.zero.pseudo %v74
  %v91 = vcvt.f32.s32.to.zero.pseudo %v75
  %v92 = vcvt.f32.s32.to.zero.pseudo %v76
  %v93 = vcvt.f32.s32.to.zero.pseudo %v77
  %v94 = vcvt.f32.s32.to.zero.pseudo %v78
  %v95 = vcvt.f32.s32.to.zero.pseudo %v79
  %v96 = vcvt.f32.s32.to.zero.pseudo %v80
  %v97 = vlaneseq
  %v98 = vand.u32 %v97, 127
  %99 = vset.pattern.permute.xlu0 0
  %100 = vperm.xlu0 %99, %v81
  %v101 = vpop.permute.xlu0 %100
  %102 = vset.pattern.permute.xlu0 0
  %103 = vperm.xlu0 %102, %v82
  %v104 = vpop.permute.xlu0 %103
  %105 = vset.pattern.permute.xlu0 0
  %106 = vperm.xlu0 %105, %v83
  %v107 = vpop.permute.xlu0 %106
  %108 = vset.pattern.permute.xlu0 0
  %109 = vperm.xlu0 %108, %v84
  %v110 = vpop.permute.xlu0 %109
  %111 = vset.pattern.permute.xlu0 0
  %112 = vperm.xlu0 %111, %v85
  %v113 = vpop.permute.xlu0 %112
  %114 = vset.pattern.permute.xlu0 0
  %115 = vperm.xlu0 %114, %v86
  %v116 = vpop.permute.xlu0 %115
  %117 = vset.pattern.permute.xlu0 0
  %118 = vperm.xlu0 %117, %v87
  %v119 = vpop.permute.xlu0 %118
  %120 = vset.pattern.permute.xlu0 0
  %121 = vperm.xlu0 %120, %v88
  %v122 = vpop.permute.xlu0 %121
  %123 = vset.pattern.permute.xlu0 0
  %124 = vperm.xlu0 %123, %v89
  %v125 = vpop.permute.xlu0 %124
  %126 = vset.pattern.permute.xlu0 0
  %127 = vperm.xlu0 %126, %v90
  %v128 = vpop.permute.xlu0 %127
  %129 = vset.pattern.permute.xlu0 0
  %130 = vperm.xlu0 %129, %v91
  %v131 = vpop.permute.xlu0 %130
  %132 = vset.pattern.permute.xlu0 0
  %133 = vperm.xlu0 %132, %v92
  %v134 = vpop.permute.xlu0 %133
  %135 = vset.pattern.permute.xlu0 0
  %136 = vperm.xlu0 %135, %v93
  %v137 = vpop.permute.xlu0 %136
  %138 = vset.pattern.permute.xlu0 0
  %139 = vperm.xlu0 %138, %v94
  %v140 = vpop.permute.xlu0 %139
  %141 = vset.pattern.permute.xlu0 0
  %142 = vperm.xlu0 %141, %v95
  %v143 = vpop.permute.xlu0 %142
  %144 = vset.pattern.permute.xlu0 0
  %145 = vperm.xlu0 %144, %v96
  %v146 = vpop.permute.xlu0 %145
  %vm147 = vcmp.eq.s32.totalorder %v98, %v101
  %vm148 = vcmp.eq.s32.totalorder %v98, %v104
  %vm149 = vcmp.eq.s32.totalorder %v98, %v107
  %vm150 = vcmp.eq.s32.totalorder %v98, %v110
  %vm151 = vcmp.eq.s32.totalorder %v98, %v113
  %vm152 = vcmp.eq.s32.totalorder %v98, %v116
  %vm153 = vcmp.eq.s32.totalorder %v98, %v119
  %vm154 = vcmp.eq.s32.totalorder %v98, %v122
  %vm155 = vcmp.eq.s32.totalorder %v98, %v125
  %vm156 = vcmp.eq.s32.totalorder %v98, %v128
  %vm157 = vcmp.eq.s32.totalorder %v98, %v131
  %vm158 = vcmp.eq.s32.totalorder %v98, %v134
  %vm159 = vcmp.eq.s32.totalorder %v98, %v137
  %vm160 = vcmp.eq.s32.totalorder %v98, %v140
  %vm161 = vcmp.eq.s32.totalorder %v98, %v143
  %vm162 = vcmp.eq.s32.totalorder %v98, %v146
  %v163 = vsel %vm147, 1, 0
  %v164 = vsel %vm148, 1, 0
  %v165 = vsel %vm149, 1, 0
  %v166 = vsel %vm150, 1, 0
  %v167 = vsel %vm151, 1, 0
  %v168 = vsel %vm152, 1, 0
  %v169 = vsel %vm153, 1, 0
  %v170 = vsel %vm154, 1, 0
  %v171 = vsel %vm155, 1, 0
  %v172 = vsel %vm156, 1, 0
  %v173 = vsel %vm157, 1, 0
  %v174 = vsel %vm158, 1, 0
  %v175 = vsel %vm159, 1, 0
  %v176 = vsel %vm160, 1, 0
  %v177 = vsel %vm161, 1, 0
  %v178 = vsel %vm162, 1, 0
  %v179 = vcvt.s32.f32 %v163
  %v180 = vcvt.s32.f32 %v164
  %v181 = vcvt.s32.f32 %v165
  %v182 = vcvt.s32.f32 %v166
  %v183 = vcvt.s32.f32 %v167
  %v184 = vcvt.s32.f32 %v168
  %v185 = vcvt.s32.f32 %v169
  %v186 = vcvt.s32.f32 %v170
  %v187 = vcvt.s32.f32 %v171
  %v188 = vcvt.s32.f32 %v172
  %v189 = vcvt.s32.f32 %v173
  %v190 = vcvt.s32.f32 %v174
  %v191 = vcvt.s32.f32 %v175
  %v192 = vcvt.s32.f32 %v176
  %v193 = vcvt.s32.f32 %v177
  %v194 = vcvt.s32.f32 %v178
  %vm195 = vcmask 31744
  %v196 = vsel %vm195, %v17, -inf
  %197 = vmax.xlane.f32.xlu0 %v196
  %v198 = vpop.xlane.xlu0 %197
  %v199 = vsel %vm195, %v18, -inf
  %200 = vmax.xlane.f32.xlu0 %v199
  %v201 = vpop.xlane.xlu0 %200
  %v202 = vsel %vm195, %v19, -inf
  %203 = vmax.xlane.f32.xlu0 %v202
  %v204 = vpop.xlane.xlu0 %203
  %v205 = vsel %vm195, %v20, -inf
  %206 = vmax.xlane.f32.xlu0 %v205
  %v207 = vpop.xlane.xlu0 %206
  %v208 = vsel %vm195, %v21, -inf
  %209 = vmax.xlane.f32.xlu0 %v208
  %v210 = vpop.xlane.xlu0 %209
  %v211 = vsel %vm195, %v22, -inf
  %212 = vmax.xlane.f32.xlu0 %v211
  %v213 = vpop.xlane.xlu0 %212
  %v214 = vsel %vm195, %v23, -inf
  %215 = vmax.xlane.f32.xlu0 %v214
  %v216 = vpop.xlane.xlu0 %215
  %v217 = vsel %vm195, %v24, -inf
  %218 = vmax.xlane.f32.xlu0 %v217
  %v219 = vpop.xlane.xlu0 %218
  %v220 = vsel %vm195, %v25, -inf
  %221 = vmax.xlane.f32.xlu0 %v220
  %v222 = vpop.xlane.xlu0 %221
  %v223 = vsel %vm195, %v26, -inf
  %224 = vmax.xlane.f32.xlu0 %v223
  %v225 = vpop.xlane.xlu0 %224
  %v226 = vsel %vm195, %v27, -inf
  %227 = vmax.xlane.f32.xlu0 %v226
  %v228 = vpop.xlane.xlu0 %227
  %v229 = vsel %vm195, %v28, -inf
  %230 = vmax.xlane.f32.xlu0 %v229
  %v231 = vpop.xlane.xlu0 %230
  %v232 = vsel %vm195, %v29, -inf
  %233 = vmax.xlane.f32.xlu0 %v232
  %v234 = vpop.xlane.xlu0 %233
  %v235 = vsel %vm195, %v30, -inf
  %236 = vmax.xlane.f32.xlu0 %v235
  %v237 = vpop.xlane.xlu0 %236
  %v238 = vsel %vm195, %v31, -inf
  %239 = vmax.xlane.f32.xlu0 %v238
  %v240 = vpop.xlane.xlu0 %239
  %v241 = vsel %vm195, %v32, -inf
  %242 = vmax.xlane.f32.xlu0 %v241
  %v243 = vpop.xlane.xlu0 %242
  %v244 = vsel %vm195, %v33, -inf
  %245 = vmax.xlane.f32.xlu0 %v244
  %v246 = vpop.xlane.xlu0 %245
  %v247 = vsel %vm195, %v34, -inf
  %248 = vmax.xlane.f32.xlu0 %v247
  %v249 = vpop.xlane.xlu0 %248
  %v250 = vsel %vm195, %v35, -inf
  %251 = vmax.xlane.f32.xlu0 %v250
  %v252 = vpop.xlane.xlu0 %251
  %v253 = vsel %vm195, %v36, -inf
  %254 = vmax.xlane.f32.xlu0 %v253
  %v255 = vpop.xlane.xlu0 %254
  %v256 = vsel %vm195, %v37, -inf
  %257 = vmax.xlane.f32.xlu0 %v256
  %v258 = vpop.xlane.xlu0 %257
  %v259 = vsel %vm195, %v38, -inf
  %260 = vmax.xlane.f32.xlu0 %v259
  %v261 = vpop.xlane.xlu0 %260
  %v262 = vsel %vm195, %v39, -inf
  %263 = vmax.xlane.f32.xlu0 %v262
  %v264 = vpop.xlane.xlu0 %263
  %v265 = vsel %vm195, %v40, -inf
  %266 = vmax.xlane.f32.xlu0 %v265
  %v267 = vpop.xlane.xlu0 %266
  %v268 = vsel %vm195, %v41, -inf
  %269 = vmax.xlane.f32.xlu0 %v268
  %v270 = vpop.xlane.xlu0 %269
  %v271 = vsel %vm195, %v42, -inf
  %272 = vmax.xlane.f32.xlu0 %v271
  %v273 = vpop.xlane.xlu0 %272
  %v274 = vsel %vm195, %v43, -inf
  %275 = vmax.xlane.f32.xlu0 %v274
  %v276 = vpop.xlane.xlu0 %275
  %v277 = vsel %vm195, %v44, -inf
  %278 = vmax.xlane.f32.xlu0 %v277
  %v279 = vpop.xlane.xlu0 %278
  %v280 = vsel %vm195, %v45, -inf
  %281 = vmax.xlane.f32.xlu0 %v280
  %v282 = vpop.xlane.xlu0 %281
  %v283 = vsel %vm195, %v46, -inf
  %284 = vmax.xlane.f32.xlu0 %v283
  %v285 = vpop.xlane.xlu0 %284
  %v286 = vsel %vm195, %v47, -inf
  %287 = vmax.xlane.f32.xlu0 %v286
  %v288 = vpop.xlane.xlu0 %287
  %v289 = vsel %vm195, %v48, -inf
  %290 = vmax.xlane.f32.xlu0 %v289
  %v291 = vpop.xlane.xlu0 %290
  %v292 = vsel %vm195, %v49, -inf
  %293 = vmax.xlane.f32.xlu0 %v292
  %v294 = vpop.xlane.xlu0 %293
  %v295 = vsel %vm195, %v50, -inf
  %296 = vmax.xlane.f32.xlu0 %v295
  %v297 = vpop.xlane.xlu0 %296
  %v298 = vsel %vm195, %v51, -inf
  %299 = vmax.xlane.f32.xlu0 %v298
  %v300 = vpop.xlane.xlu0 %299
  %v301 = vsel %vm195, %v52, -inf
  %302 = vmax.xlane.f32.xlu0 %v301
  %v303 = vpop.xlane.xlu0 %302
  %v304 = vsel %vm195, %v53, -inf
  %305 = vmax.xlane.f32.xlu0 %v304
  %v306 = vpop.xlane.xlu0 %305
  %v307 = vsel %vm195, %v54, -inf
  %308 = vmax.xlane.f32.xlu0 %v307
  %v309 = vpop.xlane.xlu0 %308
  %v310 = vsel %vm195, %v55, -inf
  %311 = vmax.xlane.f32.xlu0 %v310
  %v312 = vpop.xlane.xlu0 %311
  %v313 = vsel %vm195, %v56, -inf
  %314 = vmax.xlane.f32.xlu0 %v313
  %v315 = vpop.xlane.xlu0 %314
  %v316 = vsel %vm195, %v57, -inf
  %317 = vmax.xlane.f32.xlu0 %v316
  %v318 = vpop.xlane.xlu0 %317
  %v319 = vsel %vm195, %v58, -inf
  %320 = vmax.xlane.f32.xlu0 %v319
  %v321 = vpop.xlane.xlu0 %320
  %v322 = vsel %vm195, %v59, -inf
  %323 = vmax.xlane.f32.xlu0 %v322
  %v324 = vpop.xlane.xlu0 %323
  %v325 = vsel %vm195, %v60, -inf
  %326 = vmax.xlane.f32.xlu0 %v325
  %v327 = vpop.xlane.xlu0 %326
  %v328 = vsel %vm195, %v61, -inf
  %329 = vmax.xlane.f32.xlu0 %v328
  %v330 = vpop.xlane.xlu0 %329
  %v331 = vsel %vm195, %v62, -inf
  %332 = vmax.xlane.f32.xlu0 %v331
  %v333 = vpop.xlane.xlu0 %332
  %v334 = vsel %vm195, %v63, -inf
  %335 = vmax.xlane.f32.xlu0 %v334
  %v336 = vpop.xlane.xlu0 %335
  %v337 = vsel %vm195, %v64, -inf
  %338 = vmax.xlane.f32.xlu0 %v337
  %v339 = vpop.xlane.xlu0 %338
  %v340 = vsub.f32 %v17, %v198
  %v341 = vsub.f32 %v18, %v201
  %v342 = vsub.f32 %v19, %v204
  %v343 = vsub.f32 %v20, %v207
  %v344 = vsub.f32 %v21, %v210
  %v345 = vsub.f32 %v22, %v213
  %v346 = vsub.f32 %v23, %v216
  %v347 = vsub.f32 %v24, %v219
  %v348 = vsub.f32 %v25, %v222
  %v349 = vsub.f32 %v26, %v225
  %v350 = vsub.f32 %v27, %v228
  %v351 = vsub.f32 %v28, %v231
  %v352 = vsub.f32 %v29, %v234
  %v353 = vsub.f32 %v30, %v237
  %v354 = vsub.f32 %v31, %v240
  %v355 = vsub.f32 %v32, %v243
  %v356 = vsub.f32 %v33, %v246
  %v357 = vsub.f32 %v34, %v249
  %v358 = vsub.f32 %v35, %v252
  %v359 = vsub.f32 %v36, %v255
  %v360 = vsub.f32 %v37, %v258
  %v361 = vsub.f32 %v38, %v261
  %v362 = vsub.f32 %v39, %v264
  %v363 = vsub.f32 %v40, %v267
  %v364 = vsub.f32 %v41, %v270
  %v365 = vsub.f32 %v42, %v273
  %v366 = vsub.f32 %v43, %v276
  %v367 = vsub.f32 %v44, %v279
  %v368 = vsub.f32 %v45, %v282
  %v369 = vsub.f32 %v46, %v285
  %v370 = vsub.f32 %v47, %v288
  %v371 = vsub.f32 %v48, %v291
  %v372 = vsub.f32 %v49, %v294
  %v373 = vsub.f32 %v50, %v297
  %v374 = vsub.f32 %v51, %v300
  %v375 = vsub.f32 %v52, %v303
  %v376 = vsub.f32 %v53, %v306
  %v377 = vsub.f32 %v54, %v309
  %v378 = vsub.f32 %v55, %v312
  %v379 = vsub.f32 %v56, %v315
  %v380 = vsub.f32 %v57, %v318
  %v381 = vsub.f32 %v58, %v321
  %v382 = vsub.f32 %v59, %v324
  %v383 = vsub.f32 %v60, %v327
  %v384 = vsub.f32 %v61, %v330
  %v385 = vsub.f32 %v62, %v333
  %v386 = vsub.f32 %v63, %v336
  %v387 = vsub.f32 %v64, %v339
  %v388 = vmul.f32 %v340, 1.442695
  %v389 = vpow.pop %v388
  %v390 = vmul.f32 %v341, 1.442695
  %v391 = vpow.pop %v390
  %v392 = vmul.f32 %v342, 1.442695
  %v393 = vpow.pop %v392
  %v394 = vmul.f32 %v343, 1.442695
  %v395 = vpow.pop %v394
  %v396 = vmul.f32 %v344, 1.442695
  %v397 = vpow.pop %v396
  %v398 = vmul.f32 %v345, 1.442695
  %v399 = vpow.pop %v398
  %v400 = vmul.f32 %v346, 1.442695
  %v401 = vpow.pop %v400
  %v402 = vmul.f32 %v347, 1.442695
  %v403 = vpow.pop %v402
  %v404 = vmul.f32 %v348, 1.442695
  %v405 = vpow.pop %v404
  %v406 = vmul.f32 %v349, 1.442695
  %v407 = vpow.pop %v406
  %v408 = vmul.f32 %v350, 1.442695
  %v409 = vpow.pop %v408
  %v410 = vmul.f32 %v351, 1.442695
  %v411 = vpow.pop %v410
  %v412 = vmul.f32 %v352, 1.442695
  %v413 = vpow.pop %v412
  %v414 = vmul.f32 %v353, 1.442695
  %v415 = vpow.pop %v414
  %v416 = vmul.f32 %v354, 1.442695
  %v417 = vpow.pop %v416
  %v418 = vmul.f32 %v355, 1.442695
  %v419 = vpow.pop %v418
  %v420 = vmul.f32 %v356, 1.442695
  %v421 = vpow.pop %v420
  %v422 = vmul.f32 %v357, 1.442695
  %v423 = vpow.pop %v422
  %v424 = vmul.f32 %v358, 1.442695
  %v425 = vpow.pop %v424
  %v426 = vmul.f32 %v359, 1.442695
  %v427 = vpow.pop %v426
  %v428 = vmul.f32 %v360, 1.442695
  %v429 = vpow.pop %v428
  %v430 = vmul.f32 %v361, 1.442695
  %v431 = vpow.pop %v430
  %v432 = vmul.f32 %v362, 1.442695
  %v433 = vpow.pop %v432
  %v434 = vmul.f32 %v363, 1.442695
  %v435 = vpow.pop %v434
  %v436 = vmul.f32 %v364, 1.442695
  %v437 = vpow.pop %v436
  %v438 = vmul.f32 %v365, 1.442695
  %v439 = vpow.pop %v438
  %v440 = vmul.f32 %v366, 1.442695
  %v441 = vpow.pop %v440
  %v442 = vmul.f32 %v367, 1.442695
  %v443 = vpow.pop %v442
  %v444 = vmul.f32 %v368, 1.442695
  %v445 = vpow.pop %v444
  %v446 = vmul.f32 %v369, 1.442695
  %v447 = vpow.pop %v446
  %v448 = vmul.f32 %v370, 1.442695
  %v449 = vpow.pop %v448
  %v450 = vmul.f32 %v371, 1.442695
  %v451 = vpow.pop %v450
  %v452 = vmul.f32 %v372, 1.442695
  %v453 = vpow.pop %v452
  %v454 = vmul.f32 %v373, 1.442695
  %v455 = vpow.pop %v454
  %v456 = vmul.f32 %v374, 1.442695
  %v457 = vpow.pop %v456
  %v458 = vmul.f32 %v375, 1.442695
  %v459 = vpow.pop %v458
  %v460 = vmul.f32 %v376, 1.442695
  %v461 = vpow.pop %v460
  %v462 = vmul.f32 %v377, 1.442695
  %v463 = vpow.pop %v462
  %v464 = vmul.f32 %v378, 1.442695
  %v465 = vpow.pop %v464
  %v466 = vmul.f32 %v379, 1.442695
  %v467 = vpow.pop %v466
  %v468 = vmul.f32 %v380, 1.442695
  %v469 = vpow.pop %v468
  %v470 = vmul.f32 %v381, 1.442695
  %v471 = vpow.pop %v470
  %v472 = vmul.f32 %v382, 1.442695
  %v473 = vpow.pop %v472
  %v474 = vmul.f32 %v383, 1.442695
  %v475 = vpow.pop %v474
  %v476 = vmul.f32 %v384, 1.442695
  %v477 = vpow.pop %v476
  %v478 = vmul.f32 %v385, 1.442695
  %v479 = vpow.pop %v478
  %v480 = vmul.f32 %v386, 1.442695
  %v481 = vpow.pop %v480
  %v482 = vmul.f32 %v387, 1.442695
  %v483 = vpow.pop %v482
  %v484 = vsel %vm195, %v389, 0.0
  %485 = vadd.xlane.f32.xlu0 %v484
  %v486 = vpop.xlane.xlu0 %485
  %v487 = vsel %vm195, %v391, 0.0
  %488 = vadd.xlane.f32.xlu0 %v487
  %v489 = vpop.xlane.xlu0 %488
  %v490 = vsel %vm195, %v393, 0.0
  %491 = vadd.xlane.f32.xlu0 %v490
  %v492 = vpop.xlane.xlu0 %491
  %v493 = vsel %vm195, %v395, 0.0
  %494 = vadd.xlane.f32.xlu0 %v493
  %v495 = vpop.xlane.xlu0 %494
  %v496 = vsel %vm195, %v397, 0.0
  %497 = vadd.xlane.f32.xlu0 %v496
  %v498 = vpop.xlane.xlu0 %497
  %v499 = vsel %vm195, %v399, 0.0
  %500 = vadd.xlane.f32.xlu0 %v499
  %v501 = vpop.xlane.xlu0 %500
  %v502 = vsel %vm195, %v401, 0.0
  %503 = vadd.xlane.f32.xlu0 %v502
  %v504 = vpop.xlane.xlu0 %503
  %v505 = vsel %vm195, %v403, 0.0
  %506 = vadd.xlane.f32.xlu0 %v505
  %v507 = vpop.xlane.xlu0 %506
  %v508 = vsel %vm195, %v405, 0.0
  %509 = vadd.xlane.f32.xlu0 %v508
  %v510 = vpop.xlane.xlu0 %509
  %v511 = vsel %vm195, %v407, 0.0
  %512 = vadd.xlane.f32.xlu0 %v511
  %v513 = vpop.xlane.xlu0 %512
  %v514 = vsel %vm195, %v409, 0.0
  %515 = vadd.xlane.f32.xlu0 %v514
  %v516 = vpop.xlane.xlu0 %515
  %v517 = vsel %vm195, %v411, 0.0
  %518 = vadd.xlane.f32.xlu0 %v517
  %v519 = vpop.xlane.xlu0 %518
  %v520 = vsel %vm195, %v413, 0.0
  %521 = vadd.xlane.f32.xlu0 %v520
  %v522 = vpop.xlane.xlu0 %521
  %v523 = vsel %vm195, %v415, 0.0
  %524 = vadd.xlane.f32.xlu0 %v523
  %v525 = vpop.xlane.xlu0 %524
  %v526 = vsel %vm195, %v417, 0.0
  %527 = vadd.xlane.f32.xlu0 %v526
  %v528 = vpop.xlane.xlu0 %527
  %v529 = vsel %vm195, %v419, 0.0
  %530 = vadd.xlane.f32.xlu0 %v529
  %v531 = vpop.xlane.xlu0 %530
  %v532 = vsel %vm195, %v421, 0.0
  %533 = vadd.xlane.f32.xlu0 %v532
  %v534 = vpop.xlane.xlu0 %533
  %v535 = vsel %vm195, %v423, 0.0
  %536 = vadd.xlane.f32.xlu0 %v535
  %v537 = vpop.xlane.xlu0 %536
  %v538 = vsel %vm195, %v425, 0.0
  %539 = vadd.xlane.f32.xlu0 %v538
  %v540 = vpop.xlane.xlu0 %539
  %v541 = vsel %vm195, %v427, 0.0
  %542 = vadd.xlane.f32.xlu0 %v541
  %v543 = vpop.xlane.xlu0 %542
  %v544 = vsel %vm195, %v429, 0.0
  %545 = vadd.xlane.f32.xlu0 %v544
  %v546 = vpop.xlane.xlu0 %545
  %v547 = vsel %vm195, %v431, 0.0
  %548 = vadd.xlane.f32.xlu0 %v547
  %v549 = vpop.xlane.xlu0 %548
  %v550 = vsel %vm195, %v433, 0.0
  %551 = vadd.xlane.f32.xlu0 %v550
  %v552 = vpop.xlane.xlu0 %551
  %v553 = vsel %vm195, %v435, 0.0
  %554 = vadd.xlane.f32.xlu0 %v553
  %v555 = vpop.xlane.xlu0 %554
  %v556 = vsel %vm195, %v437, 0.0
  %557 = vadd.xlane.f32.xlu0 %v556
  %v558 = vpop.xlane.xlu0 %557
  %v559 = vsel %vm195, %v439, 0.0
  %560 = vadd.xlane.f32.xlu0 %v559
  %v561 = vpop.xlane.xlu0 %560
  %v562 = vsel %vm195, %v441, 0.0
  %563 = vadd.xlane.f32.xlu0 %v562
  %v564 = vpop.xlane.xlu0 %563
  %v565 = vsel %vm195, %v443, 0.0
  %566 = vadd.xlane.f32.xlu0 %v565
  %v567 = vpop.xlane.xlu0 %566
  %v568 = vsel %vm195, %v445, 0.0
  %569 = vadd.xlane.f32.xlu0 %v568
  %v570 = vpop.xlane.xlu0 %569
  %v571 = vsel %vm195, %v447, 0.0
  %572 = vadd.xlane.f32.xlu0 %v571
  %v573 = vpop.xlane.xlu0 %572
  %v574 = vsel %vm195, %v449, 0.0
  %575 = vadd.xlane.f32.xlu0 %v574
  %v576 = vpop.xlane.xlu0 %575
  %v577 = vsel %vm195, %v451, 0.0
  %578 = vadd.xlane.f32.xlu0 %v577
  %v579 = vpop.xlane.xlu0 %578
  %v580 = vsel %vm195, %v453, 0.0
  %581 = vadd.xlane.f32.xlu0 %v580
  %v582 = vpop.xlane.xlu0 %581
  %v583 = vsel %vm195, %v455, 0.0
  %584 = vadd.xlane.f32.xlu0 %v583
  %v585 = vpop.xlane.xlu0 %584
  %v586 = vsel %vm195, %v457, 0.0
  %587 = vadd.xlane.f32.xlu0 %v586
  %v588 = vpop.xlane.xlu0 %587
  %v589 = vsel %vm195, %v459, 0.0
  %590 = vadd.xlane.f32.xlu0 %v589
  %v591 = vpop.xlane.xlu0 %590
  %v592 = vsel %vm195, %v461, 0.0
  %593 = vadd.xlane.f32.xlu0 %v592
  %v594 = vpop.xlane.xlu0 %593
  %v595 = vsel %vm195, %v463, 0.0
  %596 = vadd.xlane.f32.xlu0 %v595
  %v597 = vpop.xlane.xlu0 %596
  %v598 = vsel %vm195, %v465, 0.0
  %599 = vadd.xlane.f32.xlu0 %v598
  %v600 = vpop.xlane.xlu0 %599
  %v601 = vsel %vm195, %v467, 0.0
  %602 = vadd.xlane.f32.xlu0 %v601
  %v603 = vpop.xlane.xlu0 %602
  %v604 = vsel %vm195, %v469, 0.0
  %605 = vadd.xlane.f32.xlu0 %v604
  %v606 = vpop.xlane.xlu0 %605
  %v607 = vsel %vm195, %v471, 0.0
  %608 = vadd.xlane.f32.xlu0 %v607
  %v609 = vpop.xlane.xlu0 %608
  %v610 = vsel %vm195, %v473, 0.0
  %611 = vadd.xlane.f32.xlu0 %v610
  %v612 = vpop.xlane.xlu0 %611
  %v613 = vsel %vm195, %v475, 0.0
  %614 = vadd.xlane.f32.xlu0 %v613
  %v615 = vpop.xlane.xlu0 %614
  %v616 = vsel %vm195, %v477, 0.0
  %617 = vadd.xlane.f32.xlu0 %v616
  %v618 = vpop.xlane.xlu0 %617
  %v619 = vsel %vm195, %v479, 0.0
  %620 = vadd.xlane.f32.xlu0 %v619
  %v621 = vpop.xlane.xlu0 %620
  %v622 = vsel %vm195, %v481, 0.0
  %623 = vadd.xlane.f32.xlu0 %v622
  %v624 = vpop.xlane.xlu0 %623
  %v625 = vsel %vm195, %v483, 0.0
  %626 = vadd.xlane.f32.xlu0 %v625
  %v627 = vpop.xlane.xlu0 %626
  %v628 = vlog2.pop %v486
  %v629 = vmul.f32 %v628, 0.6931472
  %v630 = vlog2.pop %v489
  %v631 = vmul.f32 %v630, 0.6931472
  %v632 = vlog2.pop %v492
  %v633 = vmul.f32 %v632, 0.6931472
  %v634 = vlog2.pop %v495
  %v635 = vmul.f32 %v634, 0.6931472
  %v636 = vlog2.pop %v498
  %v637 = vmul.f32 %v636, 0.6931472
  %v638 = vlog2.pop %v501
  %v639 = vmul.f32 %v638, 0.6931472
  %v640 = vlog2.pop %v504
  %v641 = vmul.f32 %v640, 0.6931472
  %v642 = vlog2.pop %v507
  %v643 = vmul.f32 %v642, 0.6931472
  %v644 = vlog2.pop %v510
  %v645 = vmul.f32 %v644, 0.6931472
  %v646 = vlog2.pop %v513
  %v647 = vmul.f32 %v646, 0.6931472
  %v648 = vlog2.pop %v516
  %v649 = vmul.f32 %v648, 0.6931472
  %v650 = vlog2.pop %v519
  %v651 = vmul.f32 %v650, 0.6931472
  %v652 = vlog2.pop %v522
  %v653 = vmul.f32 %v652, 0.6931472
  %v654 = vlog2.pop %v525
  %v655 = vmul.f32 %v654, 0.6931472
  %v656 = vlog2.pop %v528
  %v657 = vmul.f32 %v656, 0.6931472
  %v658 = vlog2.pop %v531
  %v659 = vmul.f32 %v658, 0.6931472
  %v660 = vlog2.pop %v534
  %v661 = vmul.f32 %v660, 0.6931472
  %v662 = vlog2.pop %v537
  %v663 = vmul.f32 %v662, 0.6931472
  %v664 = vlog2.pop %v540
  %v665 = vmul.f32 %v664, 0.6931472
  %v666 = vlog2.pop %v543
  %v667 = vmul.f32 %v666, 0.6931472
  %v668 = vlog2.pop %v546
  %v669 = vmul.f32 %v668, 0.6931472
  %v670 = vlog2.pop %v549
  %v671 = vmul.f32 %v670, 0.6931472
  %v672 = vlog2.pop %v552
  %v673 = vmul.f32 %v672, 0.6931472
  %v674 = vlog2.pop %v555
  %v675 = vmul.f32 %v674, 0.6931472
  %v676 = vlog2.pop %v558
  %v677 = vmul.f32 %v676, 0.6931472
  %v678 = vlog2.pop %v561
  %v679 = vmul.f32 %v678, 0.6931472
  %v680 = vlog2.pop %v564
  %v681 = vmul.f32 %v680, 0.6931472
  %v682 = vlog2.pop %v567
  %v683 = vmul.f32 %v682, 0.6931472
  %v684 = vlog2.pop %v570
  %v685 = vmul.f32 %v684, 0.6931472
  %v686 = vlog2.pop %v573
  %v687 = vmul.f32 %v686, 0.6931472
  %v688 = vlog2.pop %v576
  %v689 = vmul.f32 %v688, 0.6931472
  %v690 = vlog2.pop %v579
  %v691 = vmul.f32 %v690, 0.6931472
  %v692 = vlog2.pop %v582
  %v693 = vmul.f32 %v692, 0.6931472
  %v694 = vlog2.pop %v585
  %v695 = vmul.f32 %v694, 0.6931472
  %v696 = vlog2.pop %v588
  %v697 = vmul.f32 %v696, 0.6931472
  %v698 = vlog2.pop %v591
  %v699 = vmul.f32 %v698, 0.6931472
  %v700 = vlog2.pop %v594
  %v701 = vmul.f32 %v700, 0.6931472
  %v702 = vlog2.pop %v597
  %v703 = vmul.f32 %v702, 0.6931472
  %v704 = vlog2.pop %v600
  %v705 = vmul.f32 %v704, 0.6931472
  %v706 = vlog2.pop %v603
  %v707 = vmul.f32 %v706, 0.6931472
  %v708 = vlog2.pop %v606
  %v709 = vmul.f32 %v708, 0.6931472
  %v710 = vlog2.pop %v609
  %v711 = vmul.f32 %v710, 0.6931472
  %v712 = vlog2.pop %v612
  %v713 = vmul.f32 %v712, 0.6931472
  %v714 = vlog2.pop %v615
  %v715 = vmul.f32 %v714, 0.6931472
  %v716 = vlog2.pop %v618
  %v717 = vmul.f32 %v716, 0.6931472
  %v718 = vlog2.pop %v621
  %v719 = vmul.f32 %v718, 0.6931472
  %v720 = vlog2.pop %v624
  %v721 = vmul.f32 %v720, 0.6931472
  %v722 = vlog2.pop %v627
  %v723 = vmul.f32 %v722, 0.6931472
  %v724 = vadd.f32 %v198, %v629
  %v725 = vadd.f32 %v201, %v631
  %v726 = vadd.f32 %v204, %v633
  %v727 = vadd.f32 %v207, %v635
  %v728 = vadd.f32 %v210, %v637
  %v729 = vadd.f32 %v213, %v639
  %v730 = vadd.f32 %v216, %v641
  %v731 = vadd.f32 %v219, %v643
  %v732 = vadd.f32 %v222, %v645
  %v733 = vadd.f32 %v225, %v647
  %v734 = vadd.f32 %v228, %v649
  %v735 = vadd.f32 %v231, %v651
  %v736 = vadd.f32 %v234, %v653
  %v737 = vadd.f32 %v237, %v655
  %v738 = vadd.f32 %v240, %v657
  %v739 = vadd.f32 %v243, %v659
  %v740 = vadd.f32 %v246, %v661
  %v741 = vadd.f32 %v249, %v663
  %v742 = vadd.f32 %v252, %v665
  %v743 = vadd.f32 %v255, %v667
  %v744 = vadd.f32 %v258, %v669
  %v745 = vadd.f32 %v261, %v671
  %v746 = vadd.f32 %v264, %v673
  %v747 = vadd.f32 %v267, %v675
  %v748 = vadd.f32 %v270, %v677
  %v749 = vadd.f32 %v273, %v679
  %v750 = vadd.f32 %v276, %v681
  %v751 = vadd.f32 %v279, %v683
  %v752 = vadd.f32 %v282, %v685
  %v753 = vadd.f32 %v285, %v687
  %v754 = vadd.f32 %v288, %v689
  %v755 = vadd.f32 %v291, %v691
  %v756 = vadd.f32 %v294, %v693
  %v757 = vadd.f32 %v297, %v695
  %v758 = vadd.f32 %v300, %v697
  %v759 = vadd.f32 %v303, %v699
  %v760 = vadd.f32 %v306, %v701
  %v761 = vadd.f32 %v309, %v703
  %v762 = vadd.f32 %v312, %v705
  %v763 = vadd.f32 %v315, %v707
  %v764 = vadd.f32 %v318, %v709
  %v765 = vadd.f32 %v321, %v711
  %v766 = vadd.f32 %v324, %v713
  %v767 = vadd.f32 %v327, %v715
  %v768 = vadd.f32 %v330, %v717
  %v769 = vadd.f32 %v333, %v719
  %v770 = vadd.f32 %v336, %v721
  %v771 = vadd.f32 %v339, %v723
  %v772 = vmul.f32 %v179, %v17
  %v773 = vmul.f32 %v180, %v18
  %v774 = vmul.f32 %v181, %v19
  %v775 = vmul.f32 %v182, %v20
  %v776 = vmul.f32 %v183, %v21
  %v777 = vmul.f32 %v184, %v22
  %v778 = vmul.f32 %v185, %v23
  %v779 = vmul.f32 %v186, %v24
  %v780 = vmul.f32 %v187, %v25
  %v781 = vmul.f32 %v188, %v26
  %v782 = vmul.f32 %v189, %v27
  %v783 = vmul.f32 %v190, %v28
  %v784 = vmul.f32 %v191, %v29
  %v785 = vmul.f32 %v192, %v30
  %v786 = vmul.f32 %v193, %v31
  %v787 = vmul.f32 %v194, %v32
  %v788 = vmul.f32 %v179, %v33
  %v789 = vmul.f32 %v180, %v34
  %v790 = vmul.f32 %v181, %v35
  %v791 = vmul.f32 %v182, %v36
  %v792 = vmul.f32 %v183, %v37
  %v793 = vmul.f32 %v184, %v38
  %v794 = vmul.f32 %v185, %v39
  %v795 = vmul.f32 %v186, %v40
  %v796 = vmul.f32 %v187, %v41
  %v797 = vmul.f32 %v188, %v42
  %v798 = vmul.f32 %v189, %v43
  %v799 = vmul.f32 %v190, %v44
  %v800 = vmul.f32 %v191, %v45
  %v801 = vmul.f32 %v192, %v46
  %v802 = vmul.f32 %v193, %v47
  %v803 = vmul.f32 %v194, %v48
  %v804 = vmul.f32 %v179, %v49
  %v805 = vmul.f32 %v180, %v50
  %v806 = vmul.f32 %v181, %v51
  %v807 = vmul.f32 %v182, %v52
  %v808 = vmul.f32 %v183, %v53
  %v809 = vmul.f32 %v184, %v54
  %v810 = vmul.f32 %v185, %v55
  %v811 = vmul.f32 %v186, %v56
  %v812 = vmul.f32 %v187, %v57
  %v813 = vmul.f32 %v188, %v58
  %v814 = vmul.f32 %v189, %v59
  %v815 = vmul.f32 %v190, %v60
  %v816 = vmul.f32 %v191, %v61
  %v817 = vmul.f32 %v192, %v62
  %v818 = vmul.f32 %v193, %v63
  %v819 = vmul.f32 %v194, %v64
  %v820 = vsel %vm195, %v772, 0.0
  %821 = vadd.xlane.f32.xlu0 %v820
  %v822 = vpop.xlane.xlu0 %821
  %v823 = vsel %vm195, %v773, 0.0
  %824 = vadd.xlane.f32.xlu0 %v823
  %v825 = vpop.xlane.xlu0 %824
  %v826 = vsel %vm195, %v774, 0.0
  %827 = vadd.xlane.f32.xlu0 %v826
  %v828 = vpop.xlane.xlu0 %827
  %v829 = vsel %vm195, %v775, 0.0
  %830 = vadd.xlane.f32.xlu0 %v829
  %v831 = vpop.xlane.xlu0 %830
  %v832 = vsel %vm195, %v776, 0.0
  %833 = vadd.xlane.f32.xlu0 %v832
  %v834 = vpop.xlane.xlu0 %833
  %v835 = vsel %vm195, %v777, 0.0
  %836 = vadd.xlane.f32.xlu0 %v835
  %v837 = vpop.xlane.xlu0 %836
  %v838 = vsel %vm195, %v778, 0.0
  %839 = vadd.xlane.f32.xlu0 %v838
  %v840 = vpop.xlane.xlu0 %839
  %v841 = vsel %vm195, %v779, 0.0
  %842 = vadd.xlane.f32.xlu0 %v841
  %v843 = vpop.xlane.xlu0 %842
  %v844 = vsel %vm195, %v780, 0.0
  %845 = vadd.xlane.f32.xlu0 %v844
  %v846 = vpop.xlane.xlu0 %845
  %v847 = vsel %vm195, %v781, 0.0
  %848 = vadd.xlane.f32.xlu0 %v847
  %v849 = vpop.xlane.xlu0 %848
  %v850 = vsel %vm195, %v782, 0.0
  %851 = vadd.xlane.f32.xlu0 %v850
  %v852 = vpop.xlane.xlu0 %851
  %v853 = vsel %vm195, %v783, 0.0
  %854 = vadd.xlane.f32.xlu0 %v853
  %v855 = vpop.xlane.xlu0 %854
  %v856 = vsel %vm195, %v784, 0.0
  %857 = vadd.xlane.f32.xlu0 %v856
  %v858 = vpop.xlane.xlu0 %857
  %v859 = vsel %vm195, %v785, 0.0
  %860 = vadd.xlane.f32.xlu0 %v859
  %v861 = vpop.xlane.xlu0 %860
  %v862 = vsel %vm195, %v786, 0.0
  %863 = vadd.xlane.f32.xlu0 %v862
  %v864 = vpop.xlane.xlu0 %863
  %v865 = vsel %vm195, %v787, 0.0
  %866 = vadd.xlane.f32.xlu0 %v865
  %v867 = vpop.xlane.xlu0 %866
  %v868 = vsel %vm195, %v788, 0.0
  %869 = vadd.xlane.f32.xlu0 %v868
  %v870 = vpop.xlane.xlu0 %869
  %v871 = vsel %vm195, %v789, 0.0
  %872 = vadd.xlane.f32.xlu0 %v871
  %v873 = vpop.xlane.xlu0 %872
  %v874 = vsel %vm195, %v790, 0.0
  %875 = vadd.xlane.f32.xlu0 %v874
  %v876 = vpop.xlane.xlu0 %875
  %v877 = vsel %vm195, %v791, 0.0
  %878 = vadd.xlane.f32.xlu0 %v877
  %v879 = vpop.xlane.xlu0 %878
  %v880 = vsel %vm195, %v792, 0.0
  %881 = vadd.xlane.f32.xlu0 %v880
  %v882 = vpop.xlane.xlu0 %881
  %v883 = vsel %vm195, %v793, 0.0
  %884 = vadd.xlane.f32.xlu0 %v883
  %v885 = vpop.xlane.xlu0 %884
  %v886 = vsel %vm195, %v794, 0.0
  %887 = vadd.xlane.f32.xlu0 %v886
  %v888 = vpop.xlane.xlu0 %887
  %v889 = vsel %vm195, %v795, 0.0
  %890 = vadd.xlane.f32.xlu0 %v889
  %v891 = vpop.xlane.xlu0 %890
  %v892 = vsel %vm195, %v796, 0.0
  %893 = vadd.xlane.f32.xlu0 %v892
  %v894 = vpop.xlane.xlu0 %893
  %v895 = vsel %vm195, %v797, 0.0
  %896 = vadd.xlane.f32.xlu0 %v895
  %v897 = vpop.xlane.xlu0 %896
  %v898 = vsel %vm195, %v798, 0.0
  %899 = vadd.xlane.f32.xlu0 %v898
  %v900 = vpop.xlane.xlu0 %899
  %v901 = vsel %vm195, %v799, 0.0
  %902 = vadd.xlane.f32.xlu0 %v901
  %v903 = vpop.xlane.xlu0 %902
  %v904 = vsel %vm195, %v800, 0.0
  %905 = vadd.xlane.f32.xlu0 %v904
  %v906 = vpop.xlane.xlu0 %905
  %v907 = vsel %vm195, %v801, 0.0
  %908 = vadd.xlane.f32.xlu0 %v907
  %v909 = vpop.xlane.xlu0 %908
  %v910 = vsel %vm195, %v802, 0.0
  %911 = vadd.xlane.f32.xlu0 %v910
  %v912 = vpop.xlane.xlu0 %911
  %v913 = vsel %vm195, %v803, 0.0
  %914 = vadd.xlane.f32.xlu0 %v913
  %v915 = vpop.xlane.xlu0 %914
  %v916 = vsel %vm195, %v804, 0.0
  %917 = vadd.xlane.f32.xlu0 %v916
  %v918 = vpop.xlane.xlu0 %917
  %v919 = vsel %vm195, %v805, 0.0
  %920 = vadd.xlane.f32.xlu0 %v919
  %v921 = vpop.xlane.xlu0 %920
  %v922 = vsel %vm195, %v806, 0.0
  %923 = vadd.xlane.f32.xlu0 %v922
  %v924 = vpop.xlane.xlu0 %923
  %v925 = vsel %vm195, %v807, 0.0
  %926 = vadd.xlane.f32.xlu0 %v925
  %v927 = vpop.xlane.xlu0 %926
  %v928 = vsel %vm195, %v808, 0.0
  %929 = vadd.xlane.f32.xlu0 %v928
  %v930 = vpop.xlane.xlu0 %929
  %v931 = vsel %vm195, %v809, 0.0
  %932 = vadd.xlane.f32.xlu0 %v931
  %v933 = vpop.xlane.xlu0 %932
  %v934 = vsel %vm195, %v810, 0.0
  %935 = vadd.xlane.f32.xlu0 %v934
  %v936 = vpop.xlane.xlu0 %935
  %v937 = vsel %vm195, %v811, 0.0
  %938 = vadd.xlane.f32.xlu0 %v937
  %v939 = vpop.xlane.xlu0 %938
  %v940 = vsel %vm195, %v812, 0.0
  %941 = vadd.xlane.f32.xlu0 %v940
  %v942 = vpop.xlane.xlu0 %941
  %v943 = vsel %vm195, %v813, 0.0
  %944 = vadd.xlane.f32.xlu0 %v943
  %v945 = vpop.xlane.xlu0 %944
  %v946 = vsel %vm195, %v814, 0.0
  %947 = vadd.xlane.f32.xlu0 %v946
  %v948 = vpop.xlane.xlu0 %947
  %v949 = vsel %vm195, %v815, 0.0
  %950 = vadd.xlane.f32.xlu0 %v949
  %v951 = vpop.xlane.xlu0 %950
  %v952 = vsel %vm195, %v816, 0.0
  %953 = vadd.xlane.f32.xlu0 %v952
  %v954 = vpop.xlane.xlu0 %953
  %v955 = vsel %vm195, %v817, 0.0
  %956 = vadd.xlane.f32.xlu0 %v955
  %v957 = vpop.xlane.xlu0 %956
  %v958 = vsel %vm195, %v818, 0.0
  %959 = vadd.xlane.f32.xlu0 %v958
  %v960 = vpop.xlane.xlu0 %959
  %v961 = vsel %vm195, %v819, 0.0
  %962 = vadd.xlane.f32.xlu0 %v961
  %v963 = vpop.xlane.xlu0 %962
  %v964 = vsub.f32 %v724, %v822
  %v965 = vsub.f32 %v725, %v825
  %v966 = vsub.f32 %v726, %v828
  %v967 = vsub.f32 %v727, %v831
  %v968 = vsub.f32 %v728, %v834
  %v969 = vsub.f32 %v729, %v837
  %v970 = vsub.f32 %v730, %v840
  %v971 = vsub.f32 %v731, %v843
  %v972 = vsub.f32 %v732, %v846
  %v973 = vsub.f32 %v733, %v849
  %v974 = vsub.f32 %v734, %v852
  %v975 = vsub.f32 %v735, %v855
  %v976 = vsub.f32 %v736, %v858
  %v977 = vsub.f32 %v737, %v861
  %v978 = vsub.f32 %v738, %v864
  %v979 = vsub.f32 %v739, %v867
  %v980 = vsub.f32 %v740, %v870
  %v981 = vsub.f32 %v741, %v873
  %v982 = vsub.f32 %v742, %v876
  %v983 = vsub.f32 %v743, %v879
  %v984 = vsub.f32 %v744, %v882
  %v985 = vsub.f32 %v745, %v885
  %v986 = vsub.f32 %v746, %v888
  %v987 = vsub.f32 %v747, %v891
  %v988 = vsub.f32 %v748, %v894
  %v989 = vsub.f32 %v749, %v897
  %v990 = vsub.f32 %v750, %v900
  %v991 = vsub.f32 %v751, %v903
  %v992 = vsub.f32 %v752, %v906
  %v993 = vsub.f32 %v753, %v909
  %v994 = vsub.f32 %v754, %v912
  %v995 = vsub.f32 %v755, %v915
  %v996 = vsub.f32 %v756, %v918
  %v997 = vsub.f32 %v757, %v921
  %v998 = vsub.f32 %v758, %v924
  %v999 = vsub.f32 %v759, %v927
  %v1000 = vsub.f32 %v760, %v930
  %v1001 = vsub.f32 %v761, %v933
  %v1002 = vsub.f32 %v762, %v936
  %v1003 = vsub.f32 %v763, %v939
  %v1004 = vsub.f32 %v764, %v942
  %v1005 = vsub.f32 %v765, %v945
  %v1006 = vsub.f32 %v766, %v948
  %v1007 = vsub.f32 %v767, %v951
  %v1008 = vsub.f32 %v768, %v954
  %v1009 = vsub.f32 %v769, %v957
  %v1010 = vsub.f32 %v770, %v960
  %v1011 = vsub.f32 %v771, %v963
  %v1012 = vmul.f32 %v65, %v964
  %v1013 = vmul.f32 %v66, %v965
  %v1014 = vmul.f32 %v67, %v966
  %v1015 = vmul.f32 %v68, %v967
  %v1016 = vmul.f32 %v69, %v968
  %v1017 = vmul.f32 %v70, %v969
  %v1018 = vmul.f32 %v71, %v970
  %v1019 = vmul.f32 %v72, %v971
  %v1020 = vmul.f32 %v73, %v972
  %v1021 = vmul.f32 %v74, %v973
  %v1022 = vmul.f32 %v75, %v974
  %v1023 = vmul.f32 %v76, %v975
  %v1024 = vmul.f32 %v77, %v976
  %v1025 = vmul.f32 %v78, %v977
  %v1026 = vmul.f32 %v79, %v978
  %v1027 = vmul.f32 %v80, %v979
  %v1028 = vmul.f32 %v65, %v980
  %v1029 = vmul.f32 %v66, %v981
  %v1030 = vmul.f32 %v67, %v982
  %v1031 = vmul.f32 %v68, %v983
  %v1032 = vmul.f32 %v69, %v984
  %v1033 = vmul.f32 %v70, %v985
  %v1034 = vmul.f32 %v71, %v986
  %v1035 = vmul.f32 %v72, %v987
  %v1036 = vmul.f32 %v73, %v988
  %v1037 = vmul.f32 %v74, %v989
  %v1038 = vmul.f32 %v75, %v990
  %v1039 = vmul.f32 %v76, %v991
  %v1040 = vmul.f32 %v77, %v992
  %v1041 = vmul.f32 %v78, %v993
  %v1042 = vmul.f32 %v79, %v994
  %v1043 = vmul.f32 %v80, %v995
  %v1044 = vmul.f32 %v65, %v996
  %v1045 = vmul.f32 %v66, %v997
  %v1046 = vmul.f32 %v67, %v998
  %v1047 = vmul.f32 %v68, %v999
  %v1048 = vmul.f32 %v69, %v1000
  %v1049 = vmul.f32 %v70, %v1001
  %v1050 = vmul.f32 %v71, %v1002
  %v1051 = vmul.f32 %v72, %v1003
  %v1052 = vmul.f32 %v73, %v1004
  %v1053 = vmul.f32 %v74, %v1005
  %v1054 = vmul.f32 %v75, %v1006
  %v1055 = vmul.f32 %v76, %v1007
  %v1056 = vmul.f32 %v77, %v1008
  %v1057 = vmul.f32 %v78, %v1009
  %v1058 = vmul.f32 %v79, %v1010
  %v1059 = vmul.f32 %v80, %v1011
  %1108 = vrot.lane.b32.xlu0 %v1012, 127
  %v1109 = vpop.permute.xlu0 %1108
  %1110 = vrot.lane.b32.xlu0 %v1013, 127
  %v1111 = vpop.permute.xlu0 %1110
  %1112 = vrot.lane.b32.xlu0 %v1014, 127
  %v1113 = vpop.permute.xlu0 %1112
  %1114 = vrot.lane.b32.xlu0 %v1015, 127
  %v1115 = vpop.permute.xlu0 %1114
  %1116 = vrot.lane.b32.xlu0 %v1016, 127
  %v1117 = vpop.permute.xlu0 %1116
  %1118 = vrot.lane.b32.xlu0 %v1017, 127
  %v1119 = vpop.permute.xlu0 %1118
  %1120 = vrot.lane.b32.xlu0 %v1018, 127
  %v1121 = vpop.permute.xlu0 %1120
  %1122 = vrot.lane.b32.xlu0 %v1019, 127
  %v1123 = vpop.permute.xlu0 %1122
  %1124 = vrot.lane.b32.xlu0 %v1020, 127
  %v1125 = vpop.permute.xlu0 %1124
  %1126 = vrot.lane.b32.xlu0 %v1021, 127
  %v1127 = vpop.permute.xlu0 %1126
  %1128 = vrot.lane.b32.xlu0 %v1022, 127
  %v1129 = vpop.permute.xlu0 %1128
  %1130 = vrot.lane.b32.xlu0 %v1023, 127
  %v1131 = vpop.permute.xlu0 %1130
  %1132 = vrot.lane.b32.xlu0 %v1024, 127
  %v1133 = vpop.permute.xlu0 %1132
  %1134 = vrot.lane.b32.xlu0 %v1025, 127
  %v1135 = vpop.permute.xlu0 %1134
  %1136 = vrot.lane.b32.xlu0 %v1026, 127
  %v1137 = vpop.permute.xlu0 %1136
  %1138 = vrot.lane.b32.xlu0 %v1027, 127
  %v1139 = vpop.permute.xlu0 %1138
  %1140 = vrot.lane.b32.xlu0 %v1028, 127
  %v1141 = vpop.permute.xlu0 %1140
  %1142 = vrot.lane.b32.xlu0 %v1029, 127
  %v1143 = vpop.permute.xlu0 %1142
  %1144 = vrot.lane.b32.xlu0 %v1030, 127
  %v1145 = vpop.permute.xlu0 %1144
  %1146 = vrot.lane.b32.xlu0 %v1031, 127
  %v1147 = vpop.permute.xlu0 %1146
  %1148 = vrot.lane.b32.xlu0 %v1032, 127
  %v1149 = vpop.permute.xlu0 %1148
  %1150 = vrot.lane.b32.xlu0 %v1033, 127
  %v1151 = vpop.permute.xlu0 %1150
  %1152 = vrot.lane.b32.xlu0 %v1034, 127
  %v1153 = vpop.permute.xlu0 %1152
  %1154 = vrot.lane.b32.xlu0 %v1035, 127
  %v1155 = vpop.permute.xlu0 %1154
  %1156 = vrot.lane.b32.xlu0 %v1036, 127
  %v1157 = vpop.permute.xlu0 %1156
  %1158 = vrot.lane.b32.xlu0 %v1037, 127
  %v1159 = vpop.permute.xlu0 %1158
  %1160 = vrot.lane.b32.xlu0 %v1038, 127
  %v1161 = vpop.permute.xlu0 %1160
  %1162 = vrot.lane.b32.xlu0 %v1039, 127
  %v1163 = vpop.permute.xlu0 %1162
  %1164 = vrot.lane.b32.xlu0 %v1040, 127
  %v1165 = vpop.permute.xlu0 %1164
  %1166 = vrot.lane.b32.xlu0 %v1041, 127
  %v1167 = vpop.permute.xlu0 %1166
  %1168 = vrot.lane.b32.xlu0 %v1042, 127
  %v1169 = vpop.permute.xlu0 %1168
  %1170 = vrot.lane.b32.xlu0 %v1043, 127
  %v1171 = vpop.permute.xlu0 %1170
  %1172 = vrot.lane.b32.xlu0 %v1044, 127
  %v1173 = vpop.permute.xlu0 %1172
  %1174 = vrot.lane.b32.xlu0 %v1045, 127
  %v1175 = vpop.permute.xlu0 %1174
  %1176 = vrot.lane.b32.xlu0 %v1046, 127
  %v1177 = vpop.permute.xlu0 %1176
  %1178 = vrot.lane.b32.xlu0 %v1047, 127
  %v1179 = vpop.permute.xlu0 %1178
  %1180 = vrot.lane.b32.xlu0 %v1048, 127
  %v1181 = vpop.permute.xlu0 %1180
  %1182 = vrot.lane.b32.xlu0 %v1049, 127
  %v1183 = vpop.permute.xlu0 %1182
  %1184 = vrot.lane.b32.xlu0 %v1050, 127
  %v1185 = vpop.permute.xlu0 %1184
  %1186 = vrot.lane.b32.xlu0 %v1051, 127
  %v1187 = vpop.permute.xlu0 %1186
  %1188 = vrot.lane.b32.xlu0 %v1052, 127
  %v1189 = vpop.permute.xlu0 %1188
  %1190 = vrot.lane.b32.xlu0 %v1053, 127
  %v1191 = vpop.permute.xlu0 %1190
  %1192 = vrot.lane.b32.xlu0 %v1054, 127
  %v1193 = vpop.permute.xlu0 %1192
  %1194 = vrot.lane.b32.xlu0 %v1055, 127
  %v1195 = vpop.permute.xlu0 %1194
  %1196 = vrot.lane.b32.xlu0 %v1056, 127
  %v1197 = vpop.permute.xlu0 %1196
  %1198 = vrot.lane.b32.xlu0 %v1057, 127
  %v1199 = vpop.permute.xlu0 %1198
  %1200 = vrot.lane.b32.xlu0 %v1058, 127
  %v1201 = vpop.permute.xlu0 %1200
  %1202 = vrot.lane.b32.xlu0 %v1059, 127
  %v1203 = vpop.permute.xlu0 %1202
  %vm1252 = vcmask 7168
  %v1253 = vsel %vm1252, %v1109, 0.0
  %v1254 = vsel %vm1252, %v1111, 0.0
  %v1255 = vadd.f32 %v1253, %v1254
  %v1256 = vsel %vm1252, %v1113, 0.0
  %v1257 = vadd.f32 %v1255, %v1256
  %v1258 = vsel %vm1252, %v1115, 0.0
  %v1259 = vadd.f32 %v1257, %v1258
  %v1260 = vsel %vm1252, %v1117, 0.0
  %v1261 = vadd.f32 %v1259, %v1260
  %v1262 = vsel %vm1252, %v1119, 0.0
  %v1263 = vadd.f32 %v1261, %v1262
  %v1264 = vsel %vm1252, %v1121, 0.0
  %v1265 = vadd.f32 %v1263, %v1264
  %v1266 = vsel %vm1252, %v1123, 0.0
  %v1267 = vadd.f32 %v1265, %v1266
  %v1268 = vsel %vm1252, %v1125, 0.0
  %v1269 = vadd.f32 %v1267, %v1268
  %v1270 = vsel %vm1252, %v1127, 0.0
  %v1271 = vadd.f32 %v1269, %v1270
  %v1272 = vsel %vm1252, %v1129, 0.0
  %v1273 = vadd.f32 %v1271, %v1272
  %v1274 = vsel %vm1252, %v1131, 0.0
  %v1275 = vadd.f32 %v1273, %v1274
  %v1276 = vsel %vm1252, %v1133, 0.0
  %v1277 = vadd.f32 %v1275, %v1276
  %v1278 = vsel %vm1252, %v1135, 0.0
  %v1279 = vadd.f32 %v1277, %v1278
  %v1280 = vsel %vm1252, %v1137, 0.0
  %v1281 = vadd.f32 %v1279, %v1280
  %v1282 = vsel %vm1252, %v1139, 0.0
  %v1283 = vadd.f32 %v1281, %v1282
  %v1284 = vsel %vm1252, %v1141, 0.0
  %v1285 = vadd.f32 %v1283, %v1284
  %v1286 = vsel %vm1252, %v1143, 0.0
  %v1287 = vadd.f32 %v1285, %v1286
  %v1288 = vsel %vm1252, %v1145, 0.0
  %v1289 = vadd.f32 %v1287, %v1288
  %v1290 = vsel %vm1252, %v1147, 0.0
  %v1291 = vadd.f32 %v1289, %v1290
  %v1292 = vsel %vm1252, %v1149, 0.0
  %v1293 = vadd.f32 %v1291, %v1292
  %v1294 = vsel %vm1252, %v1151, 0.0
  %v1295 = vadd.f32 %v1293, %v1294
  %v1296 = vsel %vm1252, %v1153, 0.0
  %v1297 = vadd.f32 %v1295, %v1296
  %v1298 = vsel %vm1252, %v1155, 0.0
  %v1299 = vadd.f32 %v1297, %v1298
  %v1300 = vsel %vm1252, %v1157, 0.0
  %v1301 = vadd.f32 %v1299, %v1300
  %v1302 = vsel %vm1252, %v1159, 0.0
  %v1303 = vadd.f32 %v1301, %v1302
  %v1304 = vsel %vm1252, %v1161, 0.0
  %v1305 = vadd.f32 %v1303, %v1304
  %v1306 = vsel %vm1252, %v1163, 0.0
  %v1307 = vadd.f32 %v1305, %v1306
  %v1308 = vsel %vm1252, %v1165, 0.0
  %v1309 = vadd.f32 %v1307, %v1308
  %v1310 = vsel %vm1252, %v1167, 0.0
  %v1311 = vadd.f32 %v1309, %v1310
  %v1312 = vsel %vm1252, %v1169, 0.0
  %v1313 = vadd.f32 %v1311, %v1312
  %v1314 = vsel %vm1252, %v1171, 0.0
  %v1315 = vadd.f32 %v1313, %v1314
  %v1316 = vsel %vm1252, %v1173, 0.0
  %v1317 = vadd.f32 %v1315, %v1316
  %v1318 = vsel %vm1252, %v1175, 0.0
  %v1319 = vadd.f32 %v1317, %v1318
  %v1320 = vsel %vm1252, %v1177, 0.0
  %v1321 = vadd.f32 %v1319, %v1320
  %v1322 = vsel %vm1252, %v1179, 0.0
  %v1323 = vadd.f32 %v1321, %v1322
  %v1324 = vsel %vm1252, %v1181, 0.0
  %v1325 = vadd.f32 %v1323, %v1324
  %v1326 = vsel %vm1252, %v1183, 0.0
  %v1327 = vadd.f32 %v1325, %v1326
  %v1328 = vsel %vm1252, %v1185, 0.0
  %v1329 = vadd.f32 %v1327, %v1328
  %v1330 = vsel %vm1252, %v1187, 0.0
  %v1331 = vadd.f32 %v1329, %v1330
  %v1332 = vsel %vm1252, %v1189, 0.0
  %v1333 = vadd.f32 %v1331, %v1332
  %v1334 = vsel %vm1252, %v1191, 0.0
  %v1335 = vadd.f32 %v1333, %v1334
  %v1336 = vsel %vm1252, %v1193, 0.0
  %v1337 = vadd.f32 %v1335, %v1336
  %v1338 = vsel %vm1252, %v1195, 0.0
  %v1339 = vadd.f32 %v1337, %v1338
  %v1340 = vsel %vm1252, %v1197, 0.0
  %v1341 = vadd.f32 %v1339, %v1340
  %v1342 = vsel %vm1252, %v1199, 0.0
  %v1343 = vadd.f32 %v1341, %v1342
  %v1344 = vsel %vm1252, %v1201, 0.0
  %v1345 = vadd.f32 %v1343, %v1344
  %v1346 = vsel %vm1252, %v1203, 0.0
  %v1347 = vadd.f32 %v1345, %v1346
  %1348 = vadd.xlane.f32.xlu0 %v1347
  %v1349 = vpop.xlane.xlu0 %1348
  %v1350 = vrot.slane %v1349, 4
  %v1351 = vadd.f32 %v1349, %v1350
  %v1352 = vrot.slane %v1351, 2
  %v1353 = vadd.f32 %v1351, %v1352
  %v1354 = vrot.slane %v1353, 1
  %v1355 = vadd.f32 %v1353, %v1354
  %s1356 = vtos %v1355
  %1373 = vrot.lane.b32.xlu0 %v65, 127
  %v1374 = vpop.permute.xlu0 %1373
  %1375 = vrot.lane.b32.xlu0 %v66, 127
  %v1376 = vpop.permute.xlu0 %1375
  %1377 = vrot.lane.b32.xlu0 %v67, 127
  %v1378 = vpop.permute.xlu0 %1377
  %1379 = vrot.lane.b32.xlu0 %v68, 127
  %v1380 = vpop.permute.xlu0 %1379
  %1381 = vrot.lane.b32.xlu0 %v69, 127
  %v1382 = vpop.permute.xlu0 %1381
  %1383 = vrot.lane.b32.xlu0 %v70, 127
  %v1384 = vpop.permute.xlu0 %1383
  %1385 = vrot.lane.b32.xlu0 %v71, 127
  %v1386 = vpop.permute.xlu0 %1385
  %1387 = vrot.lane.b32.xlu0 %v72, 127
  %v1388 = vpop.permute.xlu0 %1387
  %1389 = vrot.lane.b32.xlu0 %v73, 127
  %v1390 = vpop.permute.xlu0 %1389
  %1391 = vrot.lane.b32.xlu0 %v74, 127
  %v1392 = vpop.permute.xlu0 %1391
  %1393 = vrot.lane.b32.xlu0 %v75, 127
  %v1394 = vpop.permute.xlu0 %1393
  %1395 = vrot.lane.b32.xlu0 %v76, 127
  %v1396 = vpop.permute.xlu0 %1395
  %1397 = vrot.lane.b32.xlu0 %v77, 127
  %v1398 = vpop.permute.xlu0 %1397
  %1399 = vrot.lane.b32.xlu0 %v78, 127
  %v1400 = vpop.permute.xlu0 %1399
  %1401 = vrot.lane.b32.xlu0 %v79, 127
  %v1402 = vpop.permute.xlu0 %1401
  %1403 = vrot.lane.b32.xlu0 %v80, 127
  %v1404 = vpop.permute.xlu0 %1403
  %v1421 = vsel %vm1252, %v1374, 0.0
  %v1422 = vsel %vm1252, %v1376, 0.0
  %v1423 = vadd.f32 %v1421, %v1422
  %v1424 = vsel %vm1252, %v1378, 0.0
  %v1425 = vadd.f32 %v1423, %v1424
  %v1426 = vsel %vm1252, %v1380, 0.0
  %v1427 = vadd.f32 %v1425, %v1426
  %v1428 = vsel %vm1252, %v1382, 0.0
  %v1429 = vadd.f32 %v1427, %v1428
  %v1430 = vsel %vm1252, %v1384, 0.0
  %v1431 = vadd.f32 %v1429, %v1430
  %v1432 = vsel %vm1252, %v1386, 0.0
  %v1433 = vadd.f32 %v1431, %v1432
  %v1434 = vsel %vm1252, %v1388, 0.0
  %v1435 = vadd.f32 %v1433, %v1434
  %v1436 = vsel %vm1252, %v1390, 0.0
  %v1437 = vadd.f32 %v1435, %v1436
  %v1438 = vsel %vm1252, %v1392, 0.0
  %v1439 = vadd.f32 %v1437, %v1438
  %v1440 = vsel %vm1252, %v1394, 0.0
  %v1441 = vadd.f32 %v1439, %v1440
  %v1442 = vsel %vm1252, %v1396, 0.0
  %v1443 = vadd.f32 %v1441, %v1442
  %v1444 = vsel %vm1252, %v1398, 0.0
  %v1445 = vadd.f32 %v1443, %v1444
  %v1446 = vsel %vm1252, %v1400, 0.0
  %v1447 = vadd.f32 %v1445, %v1446
  %v1448 = vsel %vm1252, %v1402, 0.0
  %v1449 = vadd.f32 %v1447, %v1448
  %v1450 = vsel %vm1252, %v1404, 0.0
  %v1451 = vadd.f32 %v1449, %v1450
  %1452 = vadd.xlane.f32.xlu0 %v1451
  %v1453 = vpop.xlane.xlu0 %1452
  %v1454 = vrot.slane %v1453, 4
  %v1455 = vadd.f32 %v1453, %v1454
  %v1456 = vrot.slane %v1455, 2
  %v1457 = vadd.f32 %v1455, %v1456
  %v1458 = vrot.slane %v1457, 1
  %v1459 = vadd.f32 %v1457, %v1458
  %s1460 = vtos %v1459
  %v1461 = vld [vmem:[%s1] sm:$0xff]
  %v1462 = vld [vmem:[%s1 + $0x8] sm:$0xff]
  %v1463 = vld [vmem:[%s1 + $0x10] sm:$0xff]
  %v1464 = vld [vmem:[%s3] sm:$0x3]
  %v1465 = vld [vmem:[%s3 + $0x2] sm:$0x1]
  %v1466 = vld [vmem:[%s3 + $0x3] sm:$0x1]
  %v1467 = vsub.f32 %v1461, %v1464
  %v1468 = vsub.f32 %v1462, %v1464
  %v1469 = vsub.f32 %v1463, %v1464
  %v1470 = vand.u32 2147483647, %v1467
  %v1471 = vand.u32 2147483647, %v1468
  %v1472 = vand.u32 2147483647, %v1469
  %v1473 = vlaneseq
  %v1474 = vshrl.u32 %v1473, 7
  %v1475 = vsub.s32 0, %v1474
  %v1476 = vrot.slane %v1466, %v1475
  %v1477 = vmul.f32 %v1470, %v1476
  %v1478 = vmul.f32 %v1471, %v1476
  %v1479 = vmul.f32 %v1472, %v1476
  %vm1480 = vcmask 1041408
  %v1481 = vsel %vm1480, %v1477, 0.0
  %v1482 = vsel %vm1480, %v1478, 0.0
  %v1483 = vadd.f32 %v1481, %v1482
  %v1484 = vsel %vm1480, %v1479, 0.0
  %v1485 = vadd.f32 %v1483, %v1484
  %1486 = vadd.xlane.f32.xlu0 %v1485
  %v1487 = vpop.xlane.xlu0 %1486
  %v1488 = vrot.slane %v1487, 4
  %v1489 = vadd.f32 %v1487, %v1488
  %v1490 = vrot.slane %v1489, 2
  %v1491 = vadd.f32 %v1489, %v1490
  %v1492 = vrot.slane %v1491, 1
  %v1493 = vadd.f32 %v1491, %v1492
  %s1494 = vtos %v1493
  %v1496 = vrot.slane %v1465, 6
  %v1498 = vsub.f32 %v1461, %v1496
  %v1499 = vsub.f32 %v1462, %v1496
  %v1500 = vsub.f32 %v1463, %v1496
  %v1501 = vand.u32 2147483647, %v1498
  %v1502 = vand.u32 2147483647, %v1499
  %v1503 = vand.u32 2147483647, %v1500
  %v1505 = vrot.slane %v1466, 6
  %v1507 = vmul.f32 %v1501, %v1505
  %v1508 = vmul.f32 %v1502, %v1505
  %v1509 = vmul.f32 %v1503, %v1505
  %v1513 = vrot.slane %v1507, 2
  %v1514 = vrot.slane %v1508, 2
  %v1515 = vrot.slane %v1509, 2
  %vm1519 = vcmask 1040384
  %v1520 = vsel %vm1519, %v1513, 0.0
  %v1521 = vsel %vm1519, %v1514, 0.0
  %v1522 = vadd.f32 %v1520, %v1521
  %v1523 = vsel %vm1519, %v1515, 0.0
  %v1524 = vadd.f32 %v1522, %v1523
  %1525 = vadd.xlane.f32.xlu0 %v1524
  %v1526 = vpop.xlane.xlu0 %1525
  %v1527 = vrot.slane %v1526, 4
  %v1528 = vadd.f32 %v1526, %v1527
  %v1529 = vrot.slane %v1528, 2
  %v1530 = vadd.f32 %v1528, %v1529
  %v1531 = vrot.slane %v1530, 1
  %v1532 = vadd.f32 %v1530, %v1531
  %s1533 = vtos %v1532
  %vm1534 = vcmp.eq.s32.totalorder %v98, 0
  %v1535 = vstv %s1356
  %v1536 = vsel %vm1534, %v1535, 0.0
  %vm1537 = vcmp.eq.s32.totalorder %v98, 1
  %v1538 = vstv %s1460
  %v1539 = vsel %vm1537, %v1538, 0.0
  %v1540 = vadd.f32 %v1536, %v1539
  %vm1541 = vcmp.eq.s32.totalorder %v98, 2
  %v1542 = vstv %s1494
  %v1543 = vsel %vm1541, %v1542, 0.0
  %v1544 = vadd.f32 %v1540, %v1543
  %vm1545 = vcmp.eq.s32.totalorder %v98, 3
  %v1546 = vstv %s1533
  %v1547 = vsel %vm1545, %v1546, 0.0
  %v1548 = vadd.f32 %v1544, %v1547
  %1549 = vst [vmem:[%s4] sm:$0xff] %v1548
  // Predicated region
  $region18: #{set_criterion_forward.1} parent=0 // pred_check
    _
  $region19: #{set_criterion_forward.1} parent=0 // pred_check_branch
    %1551 = sbr.rel (0) target = $region21
  $region20: #{set_criterion_forward.1} parent=0 // pred_region
    _
  $region21: #{set_criterion_forward.1} parent=0 // pred_fallthru
    _
  // Predicated region
  $region22: #{set_criterion_forward.1} parent=0 // pred_check
    _
  $region23: #{set_criterion_forward.1} parent=0 // pred_check_branch
    %1553 = sbr.rel (0) target = $region25
  $region24: #{set_criterion_forward.1} parent=0 // pred_region
    _
  $region25: #{set_criterion_forward.1} parent=0 // pred_fallthru
    _

</llo_original>
